<compile_context>
chip_gen: v7x
topology: tpu7x:2x2x1
jax: 0.10.0
libtpu: 0.0.40
codegen_flags: <defaults>
</compile_context>

<pallas_src>
import functools

import jax
import jax.numpy as jnp
from jax.experimental import pallas as pl
from jax.experimental.pallas import tpu as pltpu


# ----------------------------------------------------------------------------- #
# Fused Pallas kernel
# ----------------------------------------------------------------------------- #
def _fused_vae_kernel(*refs, n_groups, enc_plan, head_plan, dec_plan, out_plan,
                      lat_pad):
    # ref layout: x, noise, biases, w_group_0..w_group_{n_groups-1}, out, ybn
    x_ref, noise_ref, bias_ref = refs[0], refs[1], refs[2]
    w_refs = refs[3:3 + n_groups]
    out_ref = refs[3 + n_groups]
    ybn_ref = refs[4 + n_groups]

    # Load the packed bias/gamma/beta slab once (a few vregs); slice by value.
    b_all = bias_ref[...]                                   # (rows, maxW) f32

    def linear(h_bf16, gid, slot, brow, width):
        w = w_refs[gid][slot]                               # (K, N) bf16, static slot
        y = jnp.dot(h_bf16, w, preferred_element_type=jnp.float32)
        return y + b_all[brow:brow + 1, :width]             # f32 epilogue

    # ---- encoder: Linear + ReLU chain (bf16 MXU operands, f32 epilogues) ----
    h = x_ref[...]                                          # (B, n_input) bf16
    for (gid, slot, brow, width) in enc_plan:
        h = jnp.maximum(linear(h, gid, slot, brow, width), 0.0).astype(jnp.bfloat16)

    # ---- fused z_mean / z_var head + joint BatchNorm1d (training stats) ----
    gid, slot, b_b, b_g, b_bt = head_plan
    y = linear(h, gid, slot, b_b, 2 * lat_pad)              # (B, 2*lat_pad) f32
    mu = jnp.mean(y, axis=0, keepdims=True)
    var = jnp.mean((y - mu) * (y - mu), axis=0, keepdims=True)
    ybn = ((y - mu) * jax.lax.rsqrt(var + 1e-5)
           * b_all[b_g:b_g + 1, :2 * lat_pad]
           + b_all[b_bt:b_bt + 1, :2 * lat_pad])

    # ---- reparameterization (both blocks are 128-lane aligned; pad cols = 0) ----
    mean_blk = ybn[:, :lat_pad]
    logv_blk = ybn[:, lat_pad:2 * lat_pad]
    z = noise_ref[...] * jnp.exp(0.5 * logv_blk) + mean_blk  # (B, lat_pad) f32

    # ---- decoder: Linear + ReLU chain, then Linear + Sigmoid ----
    d = z.astype(jnp.bfloat16)
    for (gid, slot, brow, width) in dec_plan:
        d = jnp.maximum(linear(d, gid, slot, brow, width), 0.0).astype(jnp.bfloat16)
    gid, slot, brow, width = out_plan
    out_ref[...] = jax.nn.sigmoid(linear(d, gid, slot, brow, width)).astype(out_ref.dtype)

    # Lane-dense (B, 2*lat_pad) output slab; mean/logvar split happens in the wrapper.
    ybn_ref[...] = ybn.astype(ybn_ref.dtype)


def vae_forward(packed, x, noise):
    """Whole VAE forward as one pallas_call; everything resident in VMEM."""
    B = x.shape[0]
    n_input = packed["n_input"]
    n_latent = packed["n_latent"]
    lat_pad = packed["lat_pad"]
    w_groups = packed["w_groups"]
    biases = packed["biases"]

    x_bf = x.astype(jnp.bfloat16)
    noise_p = jnp.pad(noise.astype(jnp.float32),
                      ((0, 0), (0, lat_pad - n_latent)))     # (B, lat_pad)

    flat = [x_bf, noise_p, biases] + list(w_groups)
    out_shapes = (
        jax.ShapeDtypeStruct((B, n_input), jnp.float32),
        jax.ShapeDtypeStruct((B, 2 * lat_pad), jnp.float32),
    )

    flops = 2 * B * sum(int(g.shape[0]) * int(g.shape[1]) * int(g.shape[2])
                        for g in w_groups)
    transcendentals = B * (lat_pad + n_input)
    bytes_accessed = (sum(int(a.size) * a.dtype.itemsize for a in flat)
                      + B * n_input * 4 + B * 2 * lat_pad * 4)

    kernel = functools.partial(
        _fused_vae_kernel,
        n_groups=len(w_groups),
        enc_plan=packed["enc_plan"],
        head_plan=packed["head_plan"],
        dec_plan=packed["dec_plan"],
        out_plan=packed["out_plan"],
        lat_pad=lat_pad,
    )
    out, ybn = pl.pallas_call(
        kernel,
        out_shape=out_shapes,
        in_specs=[pl.BlockSpec(memory_space=pltpu.MemorySpace.VMEM) for _ in flat],
        out_specs=(pl.BlockSpec(memory_space=pltpu.MemorySpace.VMEM),
                   pl.BlockSpec(memory_space=pltpu.MemorySpace.VMEM)),
        cost_estimate=pl.CostEstimate(flops=int(flops),
                                      transcendentals=int(transcendentals),
                                      bytes_accessed=int(bytes_accessed)),
    )(*flat)

    mean = ybn[:, :n_latent]
    logvar = ybn[:, lat_pad:lat_pad + n_latent]
    return out, mean, logvar


# ----------------------------------------------------------------------------- #
# Parameter construction & packing
# ----------------------------------------------------------------------------- #
def _xavier_uniform(key, fan_in, fan_out):
    bound = (6.0 / (fan_in + fan_out)) ** 0.5
    return jax.random.uniform(key, (fan_in, fan_out), jnp.float32, -bound, bound)


def _linear_params(key, fan_in, fan_out):
    kw, kb = jax.random.split(key)
    w = _xavier_uniform(kw, fan_in, fan_out)
    b_bound = 1.0 / (fan_in ** 0.5)
    b = jax.random.uniform(kb, (fan_out,), jnp.float32, -b_bound, b_bound)
    return w, b


def init_raw_params(key, n_input, n_latent, topology):
    """Raw (unpacked) f32 parameters mirroring the torch module."""
    pre = [n_input] + list(topology)
    post = [n_latent] + list(topology[::-1])
    raw = {"encoder": [], "decoder": []}
    for i in range(len(pre) - 1):
        key, sub = jax.random.split(key)
        raw["encoder"].append(_linear_params(sub, pre[i], pre[i + 1]))
    key, k_mean, k_var, k_dev = jax.random.split(key, 4)
    raw["z_mean"] = _linear_params(k_mean, pre[-1], n_latent)
    raw["z_var"] = _linear_params(k_var, pre[-1], n_latent)
    # BatchNorm1d affine params (gamma=1, beta=0 at init) for each head.
    raw["bn_gamma_mean"] = jnp.ones((n_latent,), jnp.float32)
    raw["bn_beta_mean"] = jnp.zeros((n_latent,), jnp.float32)
    raw["bn_gamma_var"] = jnp.ones((n_latent,), jnp.float32)
    raw["bn_beta_var"] = jnp.zeros((n_latent,), jnp.float32)
    # z_develop exists in the torch module but is unused by forward(); kept for parity.
    raw["z_develop"] = _linear_params(k_dev, n_latent, pre[-1])
    for i in range(len(post) - 1):
        key, sub = jax.random.split(key)
        raw["decoder"].append(_linear_params(sub, post[i], post[i + 1]))
    key, k_out = jax.random.split(key)
    raw["output"] = _linear_params(k_out, post[-1], n_input)
    return raw


def pack_params(raw, n_input, n_latent, lat_pad=128):
    """Pack parameters into few large VMEM inputs + static index plans.

    * Weights (bf16) are grouped by shape and stacked -> one 3-D array per shape.
    * Biases / BN gamma / BN beta (f32) are padded to a common lane width and
      stacked into one (rows, maxW) slab.
    * The z_mean / z_var heads become one (H, 2*lat_pad) matmul with each head
      starting on a 128-lane boundary; the first decoder weight's K dim is
      zero-padded n_latent -> lat_pad.
    """
    groups, order = {}, []

    def add_w(w_f32):
        w = w_f32.astype(jnp.bfloat16)
        key = tuple(int(s) for s in w.shape)
        if key not in groups:
            groups[key] = []
            order.append(key)
        groups[key].append(w)
        return key, len(groups[key]) - 1

    bias_rows = []

    def add_b(vec_f32):
        bias_rows.append(jnp.ravel(vec_f32).astype(jnp.float32))
        return len(bias_rows) - 1

    enc_plan = []
    for (w, b) in raw["encoder"]:
        key, slot = add_w(w)
        enc_plan.append((key, slot, add_b(b), int(w.shape[1])))

    # Fused, 128-lane-aligned z_mean / z_var head (+ joint BN affine params).
    wm, bm = raw["z_mean"]
    wv, bv = raw["z_var"]
    H = wm.shape[0]
    head_w = jnp.zeros((H, 2 * lat_pad), jnp.float32)
    head_w = head_w.at[:, :n_latent].set(wm).at[:, lat_pad:lat_pad + n_latent].set(wv)
    head_b = jnp.zeros((2 * lat_pad,), jnp.float32)
    head_b = head_b.at[:n_latent].set(bm).at[lat_pad:lat_pad + n_latent].set(bv)
    gamma = jnp.zeros((2 * lat_pad,), jnp.float32)
    gamma = gamma.at[:n_latent].set(raw["bn_gamma_mean"]) \
                 .at[lat_pad:lat_pad + n_latent].set(raw["bn_gamma_var"])
    beta = jnp.zeros((2 * lat_pad,), jnp.float32)
    beta = beta.at[:n_latent].set(raw["bn_beta_mean"]) \
               .at[lat_pad:lat_pad + n_latent].set(raw["bn_beta_var"])
    key, slot = add_w(head_w)
    head_plan = (key, slot, add_b(head_b), add_b(gamma), add_b(beta))

    dec_plan = []
    for i, (w, b) in enumerate(raw["decoder"]):
        if i == 0:  # zero-pad K: n_latent -> lat_pad so z stays a full vreg
            w = jnp.zeros((lat_pad, w.shape[1]), jnp.float32).at[:n_latent, :].set(w)
        key, slot = add_w(w)
        dec_plan.append((key, slot, add_b(b), int(w.shape[1])))

    wo, bo = raw["output"]
    key, slot = add_w(wo)
    out_plan = (key, slot, add_b(bo), int(n_input))

    gid_of = {k: i for i, k in enumerate(order)}
    w_groups = tuple(jnp.stack(groups[k], axis=0) for k in order)

    def remap(p):
        return (gid_of[p[0]],) + tuple(p[1:])

    max_w = max(int(r.shape[0]) for r in bias_rows)
    biases = jnp.stack([jnp.pad(r, (0, max_w - int(r.shape[0]))) for r in bias_rows],
                       axis=0)                               # (rows, maxW) f32

    return {
        "n_input": n_input, "n_latent": n_latent, "lat_pad": lat_pad,
        "w_groups": w_groups, "biases": biases,
        "enc_plan": tuple(remap(p) for p in enc_plan),
        "head_plan": remap(head_plan),
        "dec_plan": tuple(remap(p) for p in dec_plan),
        "out_plan": remap(out_plan),
    }


# ----------------------------------------------------------------------------- #
# Pure-JAX reference (identical math: bf16 matmul operands, f32 accumulation)
# ----------------------------------------------------------------------------- #
def vae_forward_ref(raw, x, noise):
    def lin(h, w, b):
        return jnp.dot(h.astype(jnp.bfloat16), w.astype(jnp.bfloat16),
                       preferred_element_type=jnp.float32) + b

    def bn(y, gamma, beta):
        mu = jnp.mean(y, axis=0, keepdims=True)
        var = jnp.mean((y - mu) ** 2, axis=0, keepdims=True)
        return (y - mu) * jax.lax.rsqrt(var + 1e-5) * gamma + beta

    h = x
    for (w, b) in raw["encoder"]:
        h = jnp.maximum(lin(h, w, b), 0.0)
    mean = bn(lin(h, *raw["z_mean"]), raw["bn_gamma_mean"], raw["bn_beta_mean"])
    logvar = bn(lin(h, *raw["z_var"]), raw["bn_gamma_var"], raw["bn_beta_var"])
    z = noise * jnp.exp(0.5 * logvar) + mean
    d = z
    for (w, b) in raw["decoder"]:
        d = jnp.maximum(lin(d, w, b), 0.0)
    out = jax.nn.sigmoid(lin(d, *raw["output"]))
    return out, mean, logvar


# ----------------------------------------------------------------------------- #
if __name__ == "__main__":
    # B=128 fills the MXU M dimension; the whole batch stays in ONE kernel
    # invocation so the training-mode BatchNorm batch statistics stay exact.
    B = 128
    N_INPUT = 256
    N_LATENT = 32
    TOPOLOGY = [128, 128, 128]

    key = jax.random.PRNGKey(0)
    k_params, k_x, k_noise = jax.random.split(key, 3)

    raw = init_raw_params(k_params, N_INPUT, N_LATENT, TOPOLOGY)
    packed = pack_params(raw, N_INPUT, N_LATENT)

    # Methylation beta values live in [0, 1].
    x = jax.random.uniform(k_x, (B, N_INPUT), jnp.float32)
    # TODO(synk): torch.randn noise is supplied externally (deterministic/testable) rather
    # than drawn in-kernel; pltpu.prng_seed/prng_random_bits could generate it on-chip.
    noise = jax.random.normal(k_noise, (B, N_LATENT), jnp.float32)

    out, mean, logvar = jax.block_until_ready(vae_forward(packed, x, noise))
    out_r, mean_r, logvar_r = vae_forward_ref(raw, x, noise)

    assert out.shape == (B, N_INPUT)
    assert mean.shape == (B, N_LATENT) and logvar.shape == (B, N_LATENT)
    assert jnp.allclose(out, out_r, atol=2e-3, rtol=2e-3)
    assert jnp.allclose(mean, mean_r, atol=2e-3, rtol=2e-3)
    assert jnp.allclose(logvar, logvar_r, atol=2e-3, rtol=2e-3)

    print("KERNEL_OK")
</pallas_src>

<mosaic_0001>
module attributes {stable_mosaic.version = 11 : i64} {
  func.func @_fused_vae_kernel(%arg0: memref<128x256xbf16, #tpu.memory_space<vmem>>, %arg1: memref<128x128xf32, #tpu.memory_space<vmem>>, %arg2: memref<10x256xf32, #tpu.memory_space<vmem>>, %arg3: memref<1x256x128xbf16, #tpu.memory_space<vmem>>, %arg4: memref<5x128x128xbf16, #tpu.memory_space<vmem>>, %arg5: memref<2x128x256xbf16, #tpu.memory_space<vmem>>, %arg6: memref<128x256xf32, #tpu.memory_space<vmem>>, %arg7: memref<128x256xf32, #tpu.memory_space<vmem>>) attributes {dimension_semantics = [], scalar_prefetch = 0 : i64, scratch_operands = 0 : i64, tpu.core_type = #tpu.core_type<tc>} {
    %c0 = arith.constant 0 : index
    %c0_0 = arith.constant 0 : index
    %0 = vector.load %arg2[%c0, %c0_0] : memref<10x256xf32, #tpu.memory_space<vmem>>, vector<10x256xf32>
    %c0_1 = arith.constant 0 : index
    %c0_2 = arith.constant 0 : index
    %1 = vector.load %arg0[%c0_1, %c0_2] : memref<128x256xbf16, #tpu.memory_space<vmem>>, vector<128x256xbf16>
    %c0_3 = arith.constant 0 : index
    %c0_4 = arith.constant 0 : index
    %c0_5 = arith.constant 0 : index
    %2 = vector.load %arg3[%c0_3, %c0_4, %c0_5] : memref<1x256x128xbf16, #tpu.memory_space<vmem>>, vector<1x256x128xbf16>
    %3 = vector.shape_cast %2 : vector<1x256x128xbf16> to vector<256x128xbf16>
    %cst = arith.constant dense<0.000000e+00> : vector<128x128xf32>
    %4 = tpu.matmul %1, %3, %cst {dimension_numbers = #tpu.dot_dimension_numbers<[1], [0], [0], [1], [0, 0, 1, 1], [], []>} : vector<128x256xbf16>, vector<256x128xbf16>, vector<128x128xf32> -> vector<128x128xf32>
    %5 = vector.extract_strided_slice %0 {offsets = [0, 0], sizes = [1, 128], strides = [1, 1]} : vector<10x256xf32> to vector<1x128xf32>
    %6 = vector.broadcast %5 : vector<1x128xf32> to vector<128x128xf32>
    %7 = arith.addf %4, %6 : vector<128x128xf32>
    %cst_6 = arith.constant 0.000000e+00 : f32
    %8 = vector.broadcast %cst_6 : f32 to vector<128x128xf32>
    %9 = arith.maximumf %7, %8 : vector<128x128xf32>
    %10 = arith.truncf %9 : vector<128x128xf32> to vector<128x128xbf16>
    %c0_7 = arith.constant 0 : index
    %c0_8 = arith.constant 0 : index
    %c0_9 = arith.constant 0 : index
    %11 = vector.load %arg4[%c0_7, %c0_8, %c0_9] : memref<5x128x128xbf16, #tpu.memory_space<vmem>>, vector<1x128x128xbf16>
    %12 = vector.shape_cast %11 : vector<1x128x128xbf16> to vector<128x128xbf16>
    %cst_10 = arith.constant dense<0.000000e+00> : vector<128x128xf32>
    %13 = tpu.matmul %10, %12, %cst_10 {dimension_numbers = #tpu.dot_dimension_numbers<[1], [0], [0], [1], [0, 0, 1, 1], [], []>} : vector<128x128xbf16>, vector<128x128xbf16>, vector<128x128xf32> -> vector<128x128xf32>
    %14 = vector.extract_strided_slice %0 {offsets = [1, 0], sizes = [1, 128], strides = [1, 1]} : vector<10x256xf32> to vector<1x128xf32>
    %15 = vector.broadcast %14 : vector<1x128xf32> to vector<128x128xf32>
    %16 = arith.addf %13, %15 : vector<128x128xf32>
    %cst_11 = arith.constant 0.000000e+00 : f32
    %17 = vector.broadcast %cst_11 : f32 to vector<128x128xf32>
    %18 = arith.maximumf %16, %17 : vector<128x128xf32>
    %19 = arith.truncf %18 : vector<128x128xf32> to vector<128x128xbf16>
    %c1 = arith.constant 1 : index
    %c0_12 = arith.constant 0 : index
    %c0_13 = arith.constant 0 : index
    %20 = vector.load %arg4[%c1, %c0_12, %c0_13] : memref<5x128x128xbf16, #tpu.memory_space<vmem>>, vector<1x128x128xbf16>
    %21 = vector.shape_cast %20 : vector<1x128x128xbf16> to vector<128x128xbf16>
    %cst_14 = arith.constant dense<0.000000e+00> : vector<128x128xf32>
    %22 = tpu.matmul %19, %21, %cst_14 {dimension_numbers = #tpu.dot_dimension_numbers<[1], [0], [0], [1], [0, 0, 1, 1], [], []>} : vector<128x128xbf16>, vector<128x128xbf16>, vector<128x128xf32> -> vector<128x128xf32>
    %23 = vector.extract_strided_slice %0 {offsets = [2, 0], sizes = [1, 128], strides = [1, 1]} : vector<10x256xf32> to vector<1x128xf32>
    %24 = vector.broadcast %23 : vector<1x128xf32> to vector<128x128xf32>
    %25 = arith.addf %22, %24 : vector<128x128xf32>
    %cst_15 = arith.constant 0.000000e+00 : f32
    %26 = vector.broadcast %cst_15 : f32 to vector<128x128xf32>
    %27 = arith.maximumf %25, %26 : vector<128x128xf32>
    %28 = arith.truncf %27 : vector<128x128xf32> to vector<128x128xbf16>
    %c0_16 = arith.constant 0 : index
    %c0_17 = arith.constant 0 : index
    %c0_18 = arith.constant 0 : index
    %29 = vector.load %arg5[%c0_16, %c0_17, %c0_18] : memref<2x128x256xbf16, #tpu.memory_space<vmem>>, vector<1x128x256xbf16>
    %30 = vector.shape_cast %29 : vector<1x128x256xbf16> to vector<128x256xbf16>
    %cst_19 = arith.constant dense<0.000000e+00> : vector<128x256xf32>
    %31 = tpu.matmul %28, %30, %cst_19 {dimension_numbers = #tpu.dot_dimension_numbers<[1], [0], [0], [1], [0, 0, 1, 1], [], []>} : vector<128x128xbf16>, vector<128x256xbf16>, vector<128x256xf32> -> vector<128x256xf32>
    %32 = vector.extract_strided_slice %0 {offsets = [3, 0], sizes = [1, 256], strides = [1, 1]} : vector<10x256xf32> to vector<1x256xf32>
    %33 = vector.broadcast %32 : vector<1x256xf32> to vector<128x256xf32>
    %34 = arith.addf %31, %33 : vector<128x256xf32>
    %cst_20 = arith.constant dense<0.000000e+00> : vector<256xf32>
    %35 = vector.multi_reduction <add>, %34, %cst_20 [0] : vector<128x256xf32> to vector<256xf32>
    %36 = vector.shape_cast %35 : vector<256xf32> to vector<1x256xf32>
    %cst_21 = arith.constant 1.280000e+02 : f32
    %37 = vector.broadcast %cst_21 : f32 to vector<1x256xf32>
    %38 = arith.divf %36, %37 : vector<1x256xf32>
    %39 = vector.broadcast %38 : vector<1x256xf32> to vector<128x256xf32>
    %40 = arith.subf %34, %39 : vector<128x256xf32>
    %41 = vector.broadcast %38 : vector<1x256xf32> to vector<128x256xf32>
    %42 = arith.subf %34, %41 : vector<128x256xf32>
    %43 = arith.mulf %40, %42 : vector<128x256xf32>
    %cst_22 = arith.constant dense<0.000000e+00> : vector<256xf32>
    %44 = vector.multi_reduction <add>, %43, %cst_22 [0] : vector<128x256xf32> to vector<256xf32>
    %45 = vector.shape_cast %44 : vector<256xf32> to vector<1x256xf32>
    %cst_23 = arith.constant 1.280000e+02 : f32
    %46 = vector.broadcast %cst_23 : f32 to vector<1x256xf32>
    %47 = arith.divf %45, %46 : vector<1x256xf32>
    %48 = vector.broadcast %38 : vector<1x256xf32> to vector<128x256xf32>
    %49 = arith.subf %34, %48 : vector<128x256xf32>
    %cst_24 = arith.constant 9.99999974E-6 : f32
    %50 = vector.broadcast %cst_24 : f32 to vector<1x256xf32>
    %51 = arith.addf %47, %50 : vector<1x256xf32>
    %52 = math.rsqrt %51 : vector<1x256xf32>
    %53 = vector.broadcast %52 : vector<1x256xf32> to vector<128x256xf32>
    %54 = arith.mulf %49, %53 : vector<128x256xf32>
    %55 = vector.extract_strided_slice %0 {offsets = [4, 0], sizes = [1, 256], strides = [1, 1]} : vector<10x256xf32> to vector<1x256xf32>
    %56 = vector.broadcast %55 : vector<1x256xf32> to vector<128x256xf32>
    %57 = arith.mulf %54, %56 : vector<128x256xf32>
    %58 = vector.extract_strided_slice %0 {offsets = [5, 0], sizes = [1, 256], strides = [1, 1]} : vector<10x256xf32> to vector<1x256xf32>
    %59 = vector.broadcast %58 : vector<1x256xf32> to vector<128x256xf32>
    %60 = arith.addf %57, %59 : vector<128x256xf32>
    %61 = vector.extract_strided_slice %60 {offsets = [0, 0], sizes = [128, 128], strides = [1, 1]} : vector<128x256xf32> to vector<128x128xf32>
    %62 = vector.extract_strided_slice %60 {offsets = [0, 128], sizes = [128, 128], strides = [1, 1]} : vector<128x256xf32> to vector<128x128xf32>
    %c0_25 = arith.constant 0 : index
    %c0_26 = arith.constant 0 : index
    %63 = vector.load %arg1[%c0_25, %c0_26] : memref<128x128xf32, #tpu.memory_space<vmem>>, vector<128x128xf32>
    %cst_27 = arith.constant 5.000000e-01 : f32
    %64 = vector.broadcast %cst_27 : f32 to vector<128x128xf32>
    %65 = arith.mulf %64, %62 : vector<128x128xf32>
    %66 = math.exp %65 : vector<128x128xf32>
    %67 = arith.mulf %63, %66 : vector<128x128xf32>
    %68 = arith.addf %67, %61 : vector<128x128xf32>
    %69 = arith.truncf %68 : vector<128x128xf32> to vector<128x128xbf16>
    %c2 = arith.constant 2 : index
    %c0_28 = arith.constant 0 : index
    %c0_29 = arith.constant 0 : index
    %70 = vector.load %arg4[%c2, %c0_28, %c0_29] : memref<5x128x128xbf16, #tpu.memory_space<vmem>>, vector<1x128x128xbf16>
    %71 = vector.shape_cast %70 : vector<1x128x128xbf16> to vector<128x128xbf16>
    %cst_30 = arith.constant dense<0.000000e+00> : vector<128x128xf32>
    %72 = tpu.matmul %69, %71, %cst_30 {dimension_numbers = #tpu.dot_dimension_numbers<[1], [0], [0], [1], [0, 0, 1, 1], [], []>} : vector<128x128xbf16>, vector<128x128xbf16>, vector<128x128xf32> -> vector<128x128xf32>
    %73 = vector.extract_strided_slice %0 {offsets = [6, 0], sizes = [1, 128], strides = [1, 1]} : vector<10x256xf32> to vector<1x128xf32>
    %74 = vector.broadcast %73 : vector<1x128xf32> to vector<128x128xf32>
    %75 = arith.addf %72, %74 : vector<128x128xf32>
    %cst_31 = arith.constant 0.000000e+00 : f32
    %76 = vector.broadcast %cst_31 : f32 to vector<128x128xf32>
    %77 = arith.maximumf %75, %76 : vector<128x128xf32>
    %78 = arith.truncf %77 : vector<128x128xf32> to vector<128x128xbf16>
    %c3 = arith.constant 3 : index
    %c0_32 = arith.constant 0 : index
    %c0_33 = arith.constant 0 : index
    %79 = vector.load %arg4[%c3, %c0_32, %c0_33] : memref<5x128x128xbf16, #tpu.memory_space<vmem>>, vector<1x128x128xbf16>
    %80 = vector.shape_cast %79 : vector<1x128x128xbf16> to vector<128x128xbf16>
    %cst_34 = arith.constant dense<0.000000e+00> : vector<128x128xf32>
    %81 = tpu.matmul %78, %80, %cst_34 {dimension_numbers = #tpu.dot_dimension_numbers<[1], [0], [0], [1], [0, 0, 1, 1], [], []>} : vector<128x128xbf16>, vector<128x128xbf16>, vector<128x128xf32> -> vector<128x128xf32>
    %82 = vector.extract_strided_slice %0 {offsets = [7, 0], sizes = [1, 128], strides = [1, 1]} : vector<10x256xf32> to vector<1x128xf32>
    %83 = vector.broadcast %82 : vector<1x128xf32> to vector<128x128xf32>
    %84 = arith.addf %81, %83 : vector<128x128xf32>
    %cst_35 = arith.constant 0.000000e+00 : f32
    %85 = vector.broadcast %cst_35 : f32 to vector<128x128xf32>
    %86 = arith.maximumf %84, %85 : vector<128x128xf32>
    %87 = arith.truncf %86 : vector<128x128xf32> to vector<128x128xbf16>
    %c4 = arith.constant 4 : index
    %c0_36 = arith.constant 0 : index
    %c0_37 = arith.constant 0 : index
    %88 = vector.load %arg4[%c4, %c0_36, %c0_37] : memref<5x128x128xbf16, #tpu.memory_space<vmem>>, vector<1x128x128xbf16>
    %89 = vector.shape_cast %88 : vector<1x128x128xbf16> to vector<128x128xbf16>
    %cst_38 = arith.constant dense<0.000000e+00> : vector<128x128xf32>
    %90 = tpu.matmul %87, %89, %cst_38 {dimension_numbers = #tpu.dot_dimension_numbers<[1], [0], [0], [1], [0, 0, 1, 1], [], []>} : vector<128x128xbf16>, vector<128x128xbf16>, vector<128x128xf32> -> vector<128x128xf32>
    %91 = vector.extract_strided_slice %0 {offsets = [8, 0], sizes = [1, 128], strides = [1, 1]} : vector<10x256xf32> to vector<1x128xf32>
    %92 = vector.broadcast %91 : vector<1x128xf32> to vector<128x128xf32>
    %93 = arith.addf %90, %92 : vector<128x128xf32>
    %cst_39 = arith.constant 0.000000e+00 : f32
    %94 = vector.broadcast %cst_39 : f32 to vector<128x128xf32>
    %95 = arith.maximumf %93, %94 : vector<128x128xf32>
    %96 = arith.truncf %95 : vector<128x128xf32> to vector<128x128xbf16>
    %c1_40 = arith.constant 1 : index
    %c0_41 = arith.constant 0 : index
    %c0_42 = arith.constant 0 : index
    %97 = vector.load %arg5[%c1_40, %c0_41, %c0_42] : memref<2x128x256xbf16, #tpu.memory_space<vmem>>, vector<1x128x256xbf16>
    %98 = vector.shape_cast %97 : vector<1x128x256xbf16> to vector<128x256xbf16>
    %cst_43 = arith.constant dense<0.000000e+00> : vector<128x256xf32>
    %99 = tpu.matmul %96, %98, %cst_43 {dimension_numbers = #tpu.dot_dimension_numbers<[1], [0], [0], [1], [0, 0, 1, 1], [], []>} : vector<128x128xbf16>, vector<128x256xbf16>, vector<128x256xf32> -> vector<128x256xf32>
    %100 = vector.extract_strided_slice %0 {offsets = [9, 0], sizes = [1, 256], strides = [1, 1]} : vector<10x256xf32> to vector<1x256xf32>
    %101 = vector.broadcast %100 : vector<1x256xf32> to vector<128x256xf32>
    %102 = arith.addf %99, %101 : vector<128x256xf32>
    %103 = arith.negf %102 : vector<128x256xf32>
    %104 = math.exp %103 : vector<128x256xf32>
    %cst_44 = arith.constant 1.000000e+00 : f32
    %105 = vector.broadcast %cst_44 : f32 to vector<128x256xf32>
    %106 = arith.addf %105, %104 : vector<128x256xf32>
    %107 = arith.divf %105, %106 : vector<128x256xf32>
    %c0_45 = arith.constant 0 : index
    %c0_46 = arith.constant 0 : index
    %108 = vector.load %arg6[%c0_45, %c0_46] : memref<128x256xf32, #tpu.memory_space<vmem>>, vector<128x256xf32>
    tpu.vector_store %arg6[%c0_45, %c0_46], %107 {strides = array<i32>} : memref<128x256xf32, #tpu.memory_space<vmem>>, vector<128x256xf32>,
    %c0_47 = arith.constant 0 : index
    %c0_48 = arith.constant 0 : index
    %109 = vector.load %arg7[%c0_47, %c0_48] : memref<128x256xf32, #tpu.memory_space<vmem>>, vector<128x256xf32>
    tpu.vector_store %arg7[%c0_47, %c0_48], %60 {strides = array<i32>} : memref<128x256xf32, #tpu.memory_space<vmem>>, vector<128x256xf32>,
    return
  }
}

</mosaic_0001>

<llo_original>
// kernel: tpu_custom_call.1
$region0: #{tpu_custom_call.1}
  #allocation0 [shape = 'u32[]', space=smem, size = 0x4, offset = 0x4, fixed_abs, tag = 'smem constant byte address 0x4 - core index']
  #allocation1 [shape = 'u32[144,128]{1,0:T(1,128)}', space=vmem, size = 0x12000, scoped, tag = 'internal scratch']
  %s0 = inlined_call_operand.hbm [shape: bf16[128,256], index: 0, kind: input, shape index: {}]
  %s1 = inlined_call_operand.hbm [shape: f32[128,128], index: 1, kind: input, shape index: {}]
  %s2 = inlined_call_operand.hbm [shape: f32[10,256], index: 2, kind: input, shape index: {}]
  %s3 = inlined_call_operand.hbm [shape: bf16[1,256,128], index: 3, kind: input, shape index: {}]
  %s4 = inlined_call_operand.hbm [shape: bf16[5,128,128], index: 4, kind: input, shape index: {}]
  %s5 = inlined_call_operand.hbm [shape: bf16[2,128,256], index: 5, kind: input, shape index: {}]
  %s6 = inlined_call_operand.hbm [shape: f32[128,256], index: 6, kind: output, shape index: {0}]
  %s7 = inlined_call_operand.hbm [shape: f32[128,256], index: 7, kind: output, shape index: {1}]
  %8 = xla_tuple %s6, %s7
  %s9 = sld [smem:[#allocation0]]
  $region66: #{tpu_custom_call.1} parent=0
    _
  %s11 = ssub.s32 1, %s9
  %s12 = scalar_select 0, %s11, %s9
  $region1: #{tpu_custom_call.1} parent=0
    #allocation2 [shape = 'u8[65536]{0}', space=vmem, size = 0x10000, scoped, tag = 'input window, operand 0, single buffered']
    #allocation3 [shape = 's32[1]{0}', space=sflag, size = 0x4, scoped, tag = 'scoped memory for tpu_custom_call.1']
    #allocation4 [shape = 's32[1]{0}', space=sflag, size = 0x4, scoped, tag = 'scoped memory for tpu_custom_call.1']
    #allocation5 [shape = 'u8[65536]{0}', space=vmem, size = 0x10000, scoped, tag = 'input window, operand 1, single buffered']
    #allocation6 [shape = 's32[1]{0}', space=sflag, size = 0x4, scoped, tag = 'scoped memory for tpu_custom_call.1']
    #allocation7 [shape = 'u8[16384]{0}', space=vmem, size = 0x4000, scoped, tag = 'input window, operand 2, single buffered']
    #allocation8 [shape = 'u8[65536]{0}', space=vmem, size = 0x10000, scoped, tag = 'input window, operand 3, single buffered']
    #allocation9 [shape = 's32[1]{0}', space=sflag, size = 0x4, scoped, tag = 'scoped memory for tpu_custom_call.1']
    #allocation10 [shape = 'u8[163840]{0}', space=vmem, size = 0x28000, scoped, tag = 'input window, operand 4, single buffered']
    #allocation11 [shape = 'u8[131072]{0}', space=vmem, size = 0x20000, scoped, tag = 'input window, operand 5, single buffered']
    #allocation12 [shape = 's32[1]{0}', space=sflag, size = 0x4, scoped, tag = 'scoped memory for tpu_custom_call.1']
    #allocation13 [shape = 'u8[131072]{0}', space=vmem, size = 0x20000, scoped, tag = 'output window, operand 0, single buffered']
    #allocation14 [shape = 'u8[131072]{0}', space=vmem, size = 0x20000, scoped, tag = 'output window, operand 1, single buffered']
    #allocation15 [shape = 's32[1]{0}', space=sflag, size = 0x4, scoped, tag = 'scoped memory for tpu_custom_call.1']
    %13 = vsyncpa [#allocation3], 0
    %14 = vsyncpa [#allocation6], 0
    %15 = vsyncpa [#allocation9], 0
    %16 = vsyncpa [#allocation12], 0
    %17 = vsyncpa [#allocation4], 0
    %18 = vsyncpa [#allocation15], 0
    // Predicated region
    $region2: #{tpu_custom_call.1} parent=1 // pred_check
      _
    $region3: #{tpu_custom_call.1} parent=1 // pred_check_branch
      %20 = sbr.rel (0) target = $region5
    $region4: #{tpu_custom_call.1} parent=1 // pred_region
      %s22 = ssub.s32 2048, 2048
      %23 = vsyncadd [#allocation3], %s22
      %s24 = sshll.u32 [#allocation2], 4
      %s25 = int_to_ptr.vmem [resolvable:$true] %s24
      %30 = dma.hbm_to_vmem [thread:$0]  %s0, 2048, %s25, [#allocation3], 128, 128, 8
    $region5: #{tpu_custom_call.1} parent=1 // pred_fallthru
      _
    // Predicated region
    $region6: #{tpu_custom_call.1} parent=1 // pred_check
      _
    $region7: #{tpu_custom_call.1} parent=1 // pred_check_branch
      %32 = sbr.rel (0) target = $region9
    $region8: #{tpu_custom_call.1} parent=1 // pred_region
      %s34 = ssub.s32 2048, 2048
      %35 = vsyncadd [#allocation6], %s34
      %s36 = sshll.u32 [#allocation5], 4
      %s37 = int_to_ptr.vmem [resolvable:$true] %s36
      %42 = dma.hbm_to_vmem [thread:$0]  %s1, 2048, %s37, [#allocation6], 128, 128, 8
    $region9: #{tpu_custom_call.1} parent=1 // pred_fallthru
      _
    // Predicated region
    $region10: #{tpu_custom_call.1} parent=1 // pred_check
      _
    $region11: #{tpu_custom_call.1} parent=1 // pred_check_branch
      %44 = sbr.rel (0) target = $region13
    $region12: #{tpu_custom_call.1} parent=1 // pred_region
      %s46 = ssub.s32 512, 512
      %47 = vsyncadd [#allocation6], %s46
      %s48 = sshll.u32 [#allocation7], 4
      %s49 = int_to_ptr.vmem [resolvable:$true] %s48
      %54 = dma.hbm_to_vmem [thread:$0]  %s2, 512, %s49, [#allocation6], 256, 256, 16
    $region13: #{tpu_custom_call.1} parent=1 // pred_fallthru
      _
    // Predicated region
    $region14: #{tpu_custom_call.1} parent=1 // pred_check
      _
    $region15: #{tpu_custom_call.1} parent=1 // pred_check_branch
      %56 = sbr.rel (0) target = $region17
    $region16: #{tpu_custom_call.1} parent=1 // pred_region
      %s58 = ssub.s32 2048, 2048
      %59 = vsyncadd [#allocation9], %s58
      %s60 = sshll.u32 [#allocation8], 4
      %s61 = int_to_ptr.vmem [resolvable:$true] %s60
      %66 = dma.hbm_to_vmem [thread:$0]  %s3, 2048, %s61, [#allocation9], 64, 64, 4
    $region17: #{tpu_custom_call.1} parent=1 // pred_fallthru
      _
    // Predicated region
    $region18: #{tpu_custom_call.1} parent=1 // pred_check
      _
    $region19: #{tpu_custom_call.1} parent=1 // pred_check_branch
      %68 = sbr.rel (0) target = $region21
    $region20: #{tpu_custom_call.1} parent=1 // pred_region
      %s70 = ssub.s32 5120, 5120
      %71 = vsyncadd [#allocation9], %s70
      %s72 = sshll.u32 [#allocation10], 4
      %s73 = int_to_ptr.vmem [resolvable:$true] %s72
      %78 = dma.hbm_to_vmem [thread:$0]  %s4, 5120, %s73, [#allocation9], 64, 64, 4
    $region21: #{tpu_custom_call.1} parent=1 // pred_fallthru
      _
    // Predicated region
    $region22: #{tpu_custom_call.1} parent=1 // pred_check
      _
    $region23: #{tpu_custom_call.1} parent=1 // pred_check_branch
      %80 = sbr.rel (0) target = $region25
    $region24: #{tpu_custom_call.1} parent=1 // pred_region
      %s82 = ssub.s32 4096, 4096
      %83 = vsyncadd [#allocation12], %s82
      %s84 = sshll.u32 [#allocation11], 4
      %s85 = int_to_ptr.vmem [resolvable:$true] %s84
      %90 = dma.hbm_to_vmem [thread:$0]  %s5, 4096, %s85, [#allocation12], 128, 128, 8
    $region25: #{tpu_custom_call.1} parent=1 // pred_fallthru
      _
    // Predicated region
    $region26: #{tpu_custom_call.1} parent=1 // pred_check
      _
    $region27: #{tpu_custom_call.1} parent=1 // pred_check_branch
      %92 = sbr.rel (0) target = $region29
    $region28: #{tpu_custom_call.1} parent=1 // pred_region
      %93 = dma.done [#allocation3], 2048
    $region29: #{tpu_custom_call.1} parent=1 // pred_fallthru
      _
    // Predicated region
    $region30: #{tpu_custom_call.1} parent=1 // pred_check
      _
    $region31: #{tpu_custom_call.1} parent=1 // pred_check_branch
      %95 = sbr.rel (0) target = $region33
    $region32: #{tpu_custom_call.1} parent=1 // pred_region
      %96 = dma.done [#allocation6], 2048
    $region33: #{tpu_custom_call.1} parent=1 // pred_fallthru
      _
    // Predicated region
    $region34: #{tpu_custom_call.1} parent=1 // pred_check
      _
    $region35: #{tpu_custom_call.1} parent=1 // pred_check_branch
      %98 = sbr.rel (0) target = $region37
    $region36: #{tpu_custom_call.1} parent=1 // pred_region
      %99 = dma.done [#allocation6], 512
    $region37: #{tpu_custom_call.1} parent=1 // pred_fallthru
      _
    // Predicated region
    $region38: #{tpu_custom_call.1} parent=1 // pred_check
      _
    $region39: #{tpu_custom_call.1} parent=1 // pred_check_branch
      %101 = sbr.rel (0) target = $region41
    $region40: #{tpu_custom_call.1} parent=1 // pred_region
      %102 = dma.done [#allocation9], 2048
    $region41: #{tpu_custom_call.1} parent=1 // pred_fallthru
      _
    // Predicated region
    $region42: #{tpu_custom_call.1} parent=1 // pred_check
      _
    $region43: #{tpu_custom_call.1} parent=1 // pred_check_branch
      %104 = sbr.rel (0) target = $region45
    $region44: #{tpu_custom_call.1} parent=1 // pred_region
      %105 = dma.done [#allocation9], 5120
    $region45: #{tpu_custom_call.1} parent=1 // pred_fallthru
      _
    // Predicated region
    $region46: #{tpu_custom_call.1} parent=1 // pred_check
      _
    $region47: #{tpu_custom_call.1} parent=1 // pred_check_branch
      %107 = sbr.rel (0) target = $region49
    $region48: #{tpu_custom_call.1} parent=1 // pred_region
      %108 = dma.done [#allocation12], 4096
    $region49: #{tpu_custom_call.1} parent=1 // pred_fallthru
      _
    %v110 = vld [vmem:[#allocation7] sm:$0xff]
    %v111 = vld [vmem:[#allocation7 + $0x8] sm:$0xff]
    %v112 = vld [vmem:[#allocation7 + $0x10] sm:$0x3]
    %v113 = vld [vmem:[#allocation7 + $0x18] sm:$0x3]
    %v114 = vld [vmem:[#allocation2] sm:$0xff]
    %v115 = vld [vmem:[#allocation2 + $0x8] sm:$0xff]
    %v116 = vld [vmem:[#allocation2 + $0x10] sm:$0xff]
    %v117 = vld [vmem:[#allocation2 + $0x18] sm:$0xff]
    %v118 = vld [vmem:[#allocation2 + $0x20] sm:$0xff]
    %v119 = vld [vmem:[#allocation2 + $0x28] sm:$0xff]
    %v120 = vld [vmem:[#allocation2 + $0x30] sm:$0xff]
    %v121 = vld [vmem:[#allocation2 + $0x38] sm:$0xff]
    %v122 = vld [vmem:[#allocation2 + $0x40] sm:$0xff]
    %v123 = vld [vmem:[#allocation2 + $0x48] sm:$0xff]
    %v124 = vld [vmem:[#allocation2 + $0x50] sm:$0xff]
    %v125 = vld [vmem:[#allocation2 + $0x58] sm:$0xff]
    %v126 = vld [vmem:[#allocation2 + $0x60] sm:$0xff]
    %v127 = vld [vmem:[#allocation2 + $0x68] sm:$0xff]
    %v128 = vld [vmem:[#allocation2 + $0x70] sm:$0xff]
    %v129 = vld [vmem:[#allocation2 + $0x78] sm:$0xff]
    %v130 = vld [vmem:[#allocation8] sm:$0xf]
    %v131 = vld [vmem:[#allocation8 + $0x4] sm:$0xf]
    %v132 = vld [vmem:[#allocation8 + $0x8] sm:$0xf]
    %v133 = vld [vmem:[#allocation8 + $0xc] sm:$0xf]
    %v134 = vld [vmem:[#allocation8 + $0x10] sm:$0xf]
    %v135 = vld [vmem:[#allocation8 + $0x14] sm:$0xf]
    %v136 = vld [vmem:[#allocation8 + $0x18] sm:$0xf]
    %v137 = vld [vmem:[#allocation8 + $0x1c] sm:$0xf]
    %v138 = vld [vmem:[#allocation8 + $0x20] sm:$0xf]
    %v139 = vld [vmem:[#allocation8 + $0x24] sm:$0xf]
    %v140 = vld [vmem:[#allocation8 + $0x28] sm:$0xf]
    %v141 = vld [vmem:[#allocation8 + $0x2c] sm:$0xf]
    %v142 = vld [vmem:[#allocation8 + $0x30] sm:$0xf]
    %v143 = vld [vmem:[#allocation8 + $0x34] sm:$0xf]
    %v144 = vld [vmem:[#allocation8 + $0x38] sm:$0xf]
    %v145 = vld [vmem:[#allocation8 + $0x3c] sm:$0xf]
    %v146 = vld [vmem:[#allocation8 + $0x40] sm:$0xf]
    %v147 = vld [vmem:[#allocation8 + $0x44] sm:$0xf]
    %v148 = vld [vmem:[#allocation8 + $0x48] sm:$0xf]
    %v149 = vld [vmem:[#allocation8 + $0x4c] sm:$0xf]
    %v150 = vld [vmem:[#allocation8 + $0x50] sm:$0xf]
    %v151 = vld [vmem:[#allocation8 + $0x54] sm:$0xf]
    %v152 = vld [vmem:[#allocation8 + $0x58] sm:$0xf]
    %v153 = vld [vmem:[#allocation8 + $0x5c] sm:$0xf]
    %v154 = vld [vmem:[#allocation8 + $0x60] sm:$0xf]
    %v155 = vld [vmem:[#allocation8 + $0x64] sm:$0xf]
    %v156 = vld [vmem:[#allocation8 + $0x68] sm:$0xf]
    %v157 = vld [vmem:[#allocation8 + $0x6c] sm:$0xf]
    %v158 = vld [vmem:[#allocation8 + $0x70] sm:$0xf]
    %v159 = vld [vmem:[#allocation8 + $0x74] sm:$0xf]
    %v160 = vld [vmem:[#allocation8 + $0x78] sm:$0xf]
    %v161 = vld [vmem:[#allocation8 + $0x7c] sm:$0xf]
    %v162 = vlaneseq
    %v163 = vshrl.u32 %v162, 7
    %v164 = vsub.s32 0, %v163
    %v165 = vrot.slane %v110, %v164
    %v182 = vunpack.c.l.b16 %v114
    %v183 = vunpack.c.h.b16 %v114
    %v184 = vunpack.c.l.b16 %v115
    %v185 = vunpack.c.h.b16 %v115
    %v186 = vunpack.c.l.b16 %v116
    %v187 = vunpack.c.h.b16 %v116
    %v188 = vunpack.c.l.b16 %v117
    %v189 = vunpack.c.h.b16 %v117
    %v190 = vunpack.c.l.b16 %v118
    %v191 = vunpack.c.h.b16 %v118
    %v192 = vunpack.c.l.b16 %v119
    %v193 = vunpack.c.h.b16 %v119
    %v194 = vunpack.c.l.b16 %v120
    %v195 = vunpack.c.h.b16 %v120
    %v196 = vunpack.c.l.b16 %v121
    %v197 = vunpack.c.h.b16 %v121
    %v198 = vunpack.c.l.b16 %v122
    %v199 = vunpack.c.h.b16 %v122
    %v200 = vunpack.c.l.b16 %v123
    %v201 = vunpack.c.h.b16 %v123
    %v202 = vunpack.c.l.b16 %v124
    %v203 = vunpack.c.h.b16 %v124
    %v204 = vunpack.c.l.b16 %v125
    %v205 = vunpack.c.h.b16 %v125
    %v206 = vunpack.c.l.b16 %v126
    %v207 = vunpack.c.h.b16 %v126
    %v208 = vunpack.c.l.b16 %v127
    %v209 = vunpack.c.h.b16 %v127
    %v210 = vunpack.c.l.b16 %v128
    %v211 = vunpack.c.h.b16 %v128
    %v212 = vunpack.c.l.b16 %v129
    %v213 = vunpack.c.h.b16 %v129
    %v214 = vpack.c.b16 %v184, %v182
    %v215 = vpack.c.b16 %v185, %v183
    %v216 = vpack.c.b16 %v188, %v186
    %v217 = vpack.c.b16 %v189, %v187
    %v218 = vpack.c.b16 %v192, %v190
    %v219 = vpack.c.b16 %v193, %v191
    %v220 = vpack.c.b16 %v196, %v194
    %v221 = vpack.c.b16 %v197, %v195
    %v222 = vpack.c.b16 %v200, %v198
    %v223 = vpack.c.b16 %v201, %v199
    %v224 = vpack.c.b16 %v204, %v202
    %v225 = vpack.c.b16 %v205, %v203
    %v226 = vpack.c.b16 %v208, %v206
    %v227 = vpack.c.b16 %v209, %v207
    %v228 = vpack.c.b16 %v212, %v210
    %v229 = vpack.c.b16 %v213, %v211
    %v278 = vunpack.c.l.b16 %v130
    %v279 = vunpack.c.l.b16 %v131
    %v280 = vunpack.c.l.b16 %v132
    %v281 = vunpack.c.l.b16 %v133
    %v282 = vunpack.c.l.b16 %v134
    %v283 = vunpack.c.l.b16 %v135
    %v284 = vunpack.c.l.b16 %v136
    %v285 = vunpack.c.l.b16 %v137
    %v286 = vunpack.c.l.b16 %v138
    %v287 = vunpack.c.l.b16 %v139
    %v288 = vunpack.c.l.b16 %v140
    %v289 = vunpack.c.l.b16 %v141
    %v290 = vunpack.c.l.b16 %v142
    %v291 = vunpack.c.l.b16 %v143
    %v292 = vunpack.c.l.b16 %v144
    %v293 = vunpack.c.l.b16 %v145
    %v294 = vunpack.c.l.b16 %v146
    %v295 = vunpack.c.l.b16 %v147
    %v296 = vunpack.c.l.b16 %v148
    %v297 = vunpack.c.l.b16 %v149
    %v298 = vunpack.c.l.b16 %v150
    %v299 = vunpack.c.l.b16 %v151
    %v300 = vunpack.c.l.b16 %v152
    %v301 = vunpack.c.l.b16 %v153
    %v302 = vunpack.c.l.b16 %v154
    %v303 = vunpack.c.l.b16 %v155
    %v304 = vunpack.c.l.b16 %v156
    %v305 = vunpack.c.l.b16 %v157
    %v306 = vunpack.c.l.b16 %v158
    %v307 = vunpack.c.l.b16 %v159
    %v308 = vunpack.c.l.b16 %v160
    %v309 = vunpack.c.l.b16 %v161
    %v310 = vpack.c.b16 %v279, %v278
    %v311 = vpack.c.b16 %v281, %v280
    %v312 = vpack.c.b16 %v283, %v282
    %v313 = vpack.c.b16 %v285, %v284
    %v314 = vpack.c.b16 %v287, %v286
    %v315 = vpack.c.b16 %v289, %v288
    %v316 = vpack.c.b16 %v291, %v290
    %v317 = vpack.c.b16 %v293, %v292
    %v318 = vpack.c.b16 %v295, %v294
    %v319 = vpack.c.b16 %v297, %v296
    %v320 = vpack.c.b16 %v299, %v298
    %v321 = vpack.c.b16 %v301, %v300
    %v322 = vpack.c.b16 %v303, %v302
    %v323 = vpack.c.b16 %v305, %v304
    %v324 = vpack.c.b16 %v307, %v306
    %v325 = vpack.c.b16 %v309, %v308
    %342 = vmatprep.subr.bf16.mxu0 0
    %343 = vmatpush1.bf16.msra.mxu0 %v310
    %344 = vmatprep.subr.bf16.mxu0 0
    %345 = vmatpush1.bf16.msra.mxu0 %v311
    %346 = vmatprep.subr.bf16.mxu0 0
    %347 = vmatpush1.bf16.msra.mxu0 %v312
    %348 = vmatprep.subr.bf16.mxu0 0
    %349 = vmatpush1.bf16.msra.mxu0 %v313
    %350 = vmatprep.subr.bf16.mxu0 0
    %351 = vmatpush1.bf16.msra.mxu0 %v314
    %352 = vmatprep.subr.bf16.mxu0 0
    %353 = vmatpush1.bf16.msra.mxu0 %v315
    %354 = vmatprep.subr.bf16.mxu0 0
    %355 = vmatpush1.bf16.msra.mxu0 %v316
    %356 = vmatprep.subr.bf16.mxu0 0
    %357 = vmatpush1.bf16.msra.mxu0 %v317
    %358 = vmatprep.subr.bf16.mxu0 0
    %359 = vmatpush1.bf16.msra.mxu0 %v318
    %360 = vmatprep.subr.bf16.mxu0 0
    %361 = vmatpush1.bf16.msra.mxu0 %v319
    %362 = vmatprep.subr.bf16.mxu0 0
    %363 = vmatpush1.bf16.msra.mxu0 %v320
    %364 = vmatprep.subr.bf16.mxu0 0
    %365 = vmatpush1.bf16.msra.mxu0 %v321
    %366 = vmatprep.subr.bf16.mxu0 0
    %367 = vmatpush1.bf16.msra.mxu0 %v322
    %368 = vmatprep.subr.bf16.mxu0 0
    %369 = vmatpush1.bf16.msra.mxu0 %v323
    %370 = vmatprep.subr.bf16.mxu0 0
    %371 = vmatpush1.bf16.msra.mxu0 %v324
    %372 = vmatprep.subr.bf16.mxu0 0
    %373 = vmatpush1.bf16.msra.mxu0 %v325
    %374 = vmatprep.mubr.bf16.mxu0 %v215
    %375 = vmatmul.mubr.bf16.gmra.mrb[0].mxu0 %v214
    %v376 = vpop.f32.mrb[0].mxu0
    %v377 = vadd.f32 %v165, %v376
    %v378 = vpop.f32.mrb[0].mxu0
    %v379 = vpop.f32.mrb[0].mxu0
    %v380 = vadd.f32 %v165, %v379
    %v381 = vpop.f32.mrb[0].mxu0
    %382 = vmatprep.mubr.bf16.mxu0 %v217
    %383 = vmatmul.mubr.bf16.gmra.mrb[0].mxu0 %v216
    %v384 = vpop.f32.mrb[0].mxu0
    %v385 = vadd.f32 %v165, %v384
    %v386 = vpop.f32.mrb[0].mxu0
    %v387 = vpop.f32.mrb[0].mxu0
    %v388 = vadd.f32 %v165, %v387
    %v389 = vpop.f32.mrb[0].mxu0
    %390 = vmatprep.mubr.bf16.mxu0 %v219
    %391 = vmatmul.mubr.bf16.gmra.mrb[0].mxu0 %v218
    %v392 = vpop.f32.mrb[0].mxu0
    %v393 = vadd.f32 %v165, %v392
    %v394 = vpop.f32.mrb[0].mxu0
    %v395 = vpop.f32.mrb[0].mxu0
    %v396 = vadd.f32 %v165, %v395
    %v397 = vpop.f32.mrb[0].mxu0
    %398 = vmatprep.mubr.bf16.mxu0 %v221
    %399 = vmatmul.mubr.bf16.gmra.mrb[0].mxu0 %v220
    %v400 = vpop.f32.mrb[0].mxu0
    %v401 = vadd.f32 %v165, %v400
    %v402 = vpop.f32.mrb[0].mxu0
    %v403 = vpop.f32.mrb[0].mxu0
    %v404 = vadd.f32 %v165, %v403
    %v405 = vpop.f32.mrb[0].mxu0
    %406 = vmatprep.mubr.bf16.mxu0 %v223
    %407 = vmatmul.mubr.bf16.gmra.mrb[0].mxu0 %v222
    %v408 = vpop.f32.mrb[0].mxu0
    %v409 = vadd.f32 %v165, %v408
    %v410 = vpop.f32.mrb[0].mxu0
    %v411 = vpop.f32.mrb[0].mxu0
    %v412 = vadd.f32 %v165, %v411
    %v413 = vpop.f32.mrb[0].mxu0
    %414 = vmatprep.mubr.bf16.mxu0 %v225
    %415 = vmatmul.mubr.bf16.gmra.mrb[0].mxu0 %v224
    %v416 = vpop.f32.mrb[0].mxu0
    %v417 = vadd.f32 %v165, %v416
    %v418 = vpop.f32.mrb[0].mxu0
    %v419 = vpop.f32.mrb[0].mxu0
    %v420 = vadd.f32 %v165, %v419
    %v421 = vpop.f32.mrb[0].mxu0
    %422 = vmatprep.mubr.bf16.mxu0 %v227
    %423 = vmatmul.mubr.bf16.gmra.mrb[0].mxu0 %v226
    %v424 = vpop.f32.mrb[0].mxu0
    %v425 = vadd.f32 %v165, %v424
    %v426 = vpop.f32.mrb[0].mxu0
    %v427 = vpop.f32.mrb[0].mxu0
    %v428 = vadd.f32 %v165, %v427
    %v429 = vpop.f32.mrb[0].mxu0
    %430 = vmatprep.mubr.bf16.mxu0 %v229
    %431 = vmatmul.mubr.bf16.gmra.mrb[0].mxu0 %v228
    %v432 = vpop.f32.mrb[0].mxu0
    %v433 = vadd.f32 %v165, %v432
    %v434 = vpop.f32.mrb[0].mxu0
    %v435 = vpop.f32.mrb[0].mxu0
    %v436 = vadd.f32 %v165, %v435
    %v437 = vpop.f32.mrb[0].mxu0
    %438 = vdwg.mxu0
    %v439 = vmax.f32 %v377, 0.0
    %v440 = vmax.f32 %v380, 0.0
    %v441 = vmax.f32 %v385, 0.0
    %v442 = vmax.f32 %v388, 0.0
    %v443 = vmax.f32 %v393, 0.0
    %v444 = vmax.f32 %v396, 0.0
    %v445 = vmax.f32 %v401, 0.0
    %v446 = vmax.f32 %v404, 0.0
    %v447 = vmax.f32 %v409, 0.0
    %v448 = vmax.f32 %v412, 0.0
    %v449 = vmax.f32 %v417, 0.0
    %v450 = vmax.f32 %v420, 0.0
    %v451 = vmax.f32 %v425, 0.0
    %v452 = vmax.f32 %v428, 0.0
    %v453 = vmax.f32 %v433, 0.0
    %v454 = vmax.f32 %v436, 0.0
    %v455 = vpack.c.bf16 %v440, %v439
    %v456 = vpack.c.bf16 %v442, %v441
    %v457 = vpack.c.bf16 %v444, %v443
    %v458 = vpack.c.bf16 %v446, %v445
    %v459 = vpack.c.bf16 %v448, %v447
    %v460 = vpack.c.bf16 %v450, %v449
    %v461 = vpack.c.bf16 %v452, %v451
    %v462 = vpack.c.bf16 %v454, %v453
    %v463 = vld [vmem:[#allocation10] sm:$0xf]
    %v464 = vld [vmem:[#allocation10 + $0x4] sm:$0xf]
    %v465 = vld [vmem:[#allocation10 + $0x8] sm:$0xf]
    %v466 = vld [vmem:[#allocation10 + $0xc] sm:$0xf]
    %v467 = vld [vmem:[#allocation10 + $0x10] sm:$0xf]
    %v468 = vld [vmem:[#allocation10 + $0x14] sm:$0xf]
    %v469 = vld [vmem:[#allocation10 + $0x18] sm:$0xf]
    %v470 = vld [vmem:[#allocation10 + $0x1c] sm:$0xf]
    %v471 = vld [vmem:[#allocation10 + $0x20] sm:$0xf]
    %v472 = vld [vmem:[#allocation10 + $0x24] sm:$0xf]
    %v473 = vld [vmem:[#allocation10 + $0x28] sm:$0xf]
    %v474 = vld [vmem:[#allocation10 + $0x2c] sm:$0xf]
    %v475 = vld [vmem:[#allocation10 + $0x30] sm:$0xf]
    %v476 = vld [vmem:[#allocation10 + $0x34] sm:$0xf]
    %v477 = vld [vmem:[#allocation10 + $0x38] sm:$0xf]
    %v478 = vld [vmem:[#allocation10 + $0x3c] sm:$0xf]
    %v479 = vlaneseq
    %v480 = vshrl.u32 %v479, 7
    %v481 = vsub.s32 1, %v480
    %v482 = vrot.slane %v110, %v481
    %v499 = vunpack.c.l.b16 %v463
    %v500 = vunpack.c.l.b16 %v464
    %v501 = vunpack.c.l.b16 %v465
    %v502 = vunpack.c.l.b16 %v466
    %v503 = vunpack.c.l.b16 %v467
    %v504 = vunpack.c.l.b16 %v468
    %v505 = vunpack.c.l.b16 %v469
    %v506 = vunpack.c.l.b16 %v470
    %v507 = vunpack.c.l.b16 %v471
    %v508 = vunpack.c.l.b16 %v472
    %v509 = vunpack.c.l.b16 %v473
    %v510 = vunpack.c.l.b16 %v474
    %v511 = vunpack.c.l.b16 %v475
    %v512 = vunpack.c.l.b16 %v476
    %v513 = vunpack.c.l.b16 %v477
    %v514 = vunpack.c.l.b16 %v478
    %v515 = vpack.c.b16 %v500, %v499
    %v516 = vpack.c.b16 %v502, %v501
    %v517 = vpack.c.b16 %v504, %v503
    %v518 = vpack.c.b16 %v506, %v505
    %v519 = vpack.c.b16 %v508, %v507
    %v520 = vpack.c.b16 %v510, %v509
    %v521 = vpack.c.b16 %v512, %v511
    %v522 = vpack.c.b16 %v514, %v513
    %531 = vmatprep.subr.bf16.mxu0 0
    %532 = vmatpush1.bf16.msra.mxu0 %v515
    %533 = vmatprep.subr.bf16.mxu0 0
    %534 = vmatpush1.bf16.msra.mxu0 %v516
    %535 = vmatprep.subr.bf16.mxu0 0
    %536 = vmatpush1.bf16.msra.mxu0 %v517
    %537 = vmatprep.subr.bf16.mxu0 0
    %538 = vmatpush1.bf16.msra.mxu0 %v518
    %539 = vmatprep.subr.bf16.mxu0 0
    %540 = vmatpush1.bf16.msra.mxu0 %v519
    %541 = vmatprep.subr.bf16.mxu0 0
    %542 = vmatpush1.bf16.msra.mxu0 %v520
    %543 = vmatprep.subr.bf16.mxu0 0
    %544 = vmatpush1.bf16.msra.mxu0 %v521
    %545 = vmatprep.subr.bf16.mxu0 0
    %546 = vmatpush1.bf16.msra.mxu0 %v522
    %547 = vmatprep.subr.bf16.mxu0 0
    %548 = vmatpush1.bf16.msra.mxu0 0
    %549 = vmatprep.subr.bf16.mxu0 0
    %550 = vmatpush1.bf16.msra.mxu0 0
    %551 = vmatprep.subr.bf16.mxu0 0
    %552 = vmatpush1.bf16.msra.mxu0 0
    %553 = vmatprep.subr.bf16.mxu0 0
    %554 = vmatpush1.bf16.msra.mxu0 0
    %555 = vmatprep.subr.bf16.mxu0 0
    %556 = vmatpush1.bf16.msra.mxu0 0
    %557 = vmatprep.subr.bf16.mxu0 0
    %558 = vmatpush1.bf16.msra.mxu0 0
    %559 = vmatprep.subr.bf16.mxu0 0
    %560 = vmatpush1.bf16.msra.mxu0 0
    %561 = vmatprep.subr.bf16.mxu0 0
    %562 = vmatpush1.bf16.msra.mxu0 0
    %563 = vmatprep.mubr.bf16.mxu0 0
    %564 = vmatmul.mubr.bf16.gmra.mrb[0].mxu0 %v455
    %v565 = vpop.f32.mrb[0].mxu0
    %v566 = vadd.f32 %v482, %v565
    %v567 = vpop.f32.mrb[0].mxu0
    %v568 = vpop.f32.mrb[0].mxu0
    %v569 = vadd.f32 %v482, %v568
    %v570 = vpop.f32.mrb[0].mxu0
    %571 = vmatprep.mubr.bf16.mxu0 0
    %572 = vmatmul.mubr.bf16.gmra.mrb[0].mxu0 %v456
    %v573 = vpop.f32.mrb[0].mxu0
    %v574 = vadd.f32 %v482, %v573
    %v575 = vpop.f32.mrb[0].mxu0
    %v576 = vpop.f32.mrb[0].mxu0
    %v577 = vadd.f32 %v482, %v576
    %v578 = vpop.f32.mrb[0].mxu0
    %579 = vmatprep.mubr.bf16.mxu0 0
    %580 = vmatmul.mubr.bf16.gmra.mrb[0].mxu0 %v457
    %v581 = vpop.f32.mrb[0].mxu0
    %v582 = vadd.f32 %v482, %v581
    %v583 = vpop.f32.mrb[0].mxu0
    %v584 = vpop.f32.mrb[0].mxu0
    %v585 = vadd.f32 %v482, %v584
    %v586 = vpop.f32.mrb[0].mxu0
    %587 = vmatprep.mubr.bf16.mxu0 0
    %588 = vmatmul.mubr.bf16.gmra.mrb[0].mxu0 %v458
    %v589 = vpop.f32.mrb[0].mxu0
    %v590 = vadd.f32 %v482, %v589
    %v591 = vpop.f32.mrb[0].mxu0
    %v592 = vpop.f32.mrb[0].mxu0
    %v593 = vadd.f32 %v482, %v592
    %v594 = vpop.f32.mrb[0].mxu0
    %595 = vmatprep.mubr.bf16.mxu0 0
    %596 = vmatmul.mubr.bf16.gmra.mrb[0].mxu0 %v459
    %v597 = vpop.f32.mrb[0].mxu0
    %v598 = vadd.f32 %v482, %v597
    %v599 = vpop.f32.mrb[0].mxu0
    %v600 = vpop.f32.mrb[0].mxu0
    %v601 = vadd.f32 %v482, %v600
    %v602 = vpop.f32.mrb[0].mxu0
    %603 = vmatprep.mubr.bf16.mxu0 0
    %604 = vmatmul.mubr.bf16.gmra.mrb[0].mxu0 %v460
    %v605 = vpop.f32.mrb[0].mxu0
    %v606 = vadd.f32 %v482, %v605
    %v607 = vpop.f32.mrb[0].mxu0
    %v608 = vpop.f32.mrb[0].mxu0
    %v609 = vadd.f32 %v482, %v608
    %v610 = vpop.f32.mrb[0].mxu0
    %611 = vmatprep.mubr.bf16.mxu0 0
    %612 = vmatmul.mubr.bf16.gmra.mrb[0].mxu0 %v461
    %v613 = vpop.f32.mrb[0].mxu0
    %v614 = vadd.f32 %v482, %v613
    %v615 = vpop.f32.mrb[0].mxu0
    %v616 = vpop.f32.mrb[0].mxu0
    %v617 = vadd.f32 %v482, %v616
    %v618 = vpop.f32.mrb[0].mxu0
    %619 = vmatprep.mubr.bf16.mxu0 0
    %620 = vmatmul.mubr.bf16.gmra.mrb[0].mxu0 %v462
    %v621 = vpop.f32.mrb[0].mxu0
    %v622 = vadd.f32 %v482, %v621
    %v623 = vpop.f32.mrb[0].mxu0
    %v624 = vpop.f32.mrb[0].mxu0
    %v625 = vadd.f32 %v482, %v624
    %v626 = vpop.f32.mrb[0].mxu0
    %627 = vdwg.mxu0
    %v628 = vmax.f32 %v566, 0.0
    %v629 = vmax.f32 %v569, 0.0
    %v630 = vmax.f32 %v574, 0.0
    %v631 = vmax.f32 %v577, 0.0
    %v632 = vmax.f32 %v582, 0.0
    %v633 = vmax.f32 %v585, 0.0
    %v634 = vmax.f32 %v590, 0.0
    %v635 = vmax.f32 %v593, 0.0
    %v636 = vmax.f32 %v598, 0.0
    %v637 = vmax.f32 %v601, 0.0
    %v638 = vmax.f32 %v606, 0.0
    %v639 = vmax.f32 %v609, 0.0
    %v640 = vmax.f32 %v614, 0.0
    %v641 = vmax.f32 %v617, 0.0
    %v642 = vmax.f32 %v622, 0.0
    %v643 = vmax.f32 %v625, 0.0
    %v644 = vpack.c.bf16 %v629, %v628
    %v645 = vpack.c.bf16 %v631, %v630
    %v646 = vpack.c.bf16 %v633, %v632
    %v647 = vpack.c.bf16 %v635, %v634
    %v648 = vpack.c.bf16 %v637, %v636
    %v649 = vpack.c.bf16 %v639, %v638
    %v650 = vpack.c.bf16 %v641, %v640
    %v651 = vpack.c.bf16 %v643, %v642
    %s652 = scalar_lea.vmem [#allocation10], 64
    %v653 = vld [vmem:[%s652] sm:$0xf]
    %v654 = vld [vmem:[%s652 + $0x4] sm:$0xf]
    %v655 = vld [vmem:[%s652 + $0x8] sm:$0xf]
    %v656 = vld [vmem:[%s652 + $0xc] sm:$0xf]
    %v657 = vld [vmem:[%s652 + $0x10] sm:$0xf]
    %v658 = vld [vmem:[%s652 + $0x14] sm:$0xf]
    %v659 = vld [vmem:[%s652 + $0x18] sm:$0xf]
    %v660 = vld [vmem:[%s652 + $0x1c] sm:$0xf]
    %v661 = vld [vmem:[%s652 + $0x20] sm:$0xf]
    %v662 = vld [vmem:[%s652 + $0x24] sm:$0xf]
    %v663 = vld [vmem:[%s652 + $0x28] sm:$0xf]
    %v664 = vld [vmem:[%s652 + $0x2c] sm:$0xf]
    %v665 = vld [vmem:[%s652 + $0x30] sm:$0xf]
    %v666 = vld [vmem:[%s652 + $0x34] sm:$0xf]
    %v667 = vld [vmem:[%s652 + $0x38] sm:$0xf]
    %v668 = vld [vmem:[%s652 + $0x3c] sm:$0xf]
    %v669 = vlaneseq
    %v670 = vshrl.u32 %v669, 7
    %v671 = vsub.s32 2, %v670
    %v672 = vrot.slane %v110, %v671
    %v689 = vunpack.c.l.b16 %v653
    %v690 = vunpack.c.l.b16 %v654
    %v691 = vunpack.c.l.b16 %v655
    %v692 = vunpack.c.l.b16 %v656
    %v693 = vunpack.c.l.b16 %v657
    %v694 = vunpack.c.l.b16 %v658
    %v695 = vunpack.c.l.b16 %v659
    %v696 = vunpack.c.l.b16 %v660
    %v697 = vunpack.c.l.b16 %v661
    %v698 = vunpack.c.l.b16 %v662
    %v699 = vunpack.c.l.b16 %v663
    %v700 = vunpack.c.l.b16 %v664
    %v701 = vunpack.c.l.b16 %v665
    %v702 = vunpack.c.l.b16 %v666
    %v703 = vunpack.c.l.b16 %v667
    %v704 = vunpack.c.l.b16 %v668
    %v705 = vpack.c.b16 %v690, %v689
    %v706 = vpack.c.b16 %v692, %v691
    %v707 = vpack.c.b16 %v694, %v693
    %v708 = vpack.c.b16 %v696, %v695
    %v709 = vpack.c.b16 %v698, %v697
    %v710 = vpack.c.b16 %v700, %v699
    %v711 = vpack.c.b16 %v702, %v701
    %v712 = vpack.c.b16 %v704, %v703
    %721 = vmatprep.subr.bf16.mxu0 0
    %722 = vmatpush1.bf16.msra.mxu0 %v705
    %723 = vmatprep.subr.bf16.mxu0 0
    %724 = vmatpush1.bf16.msra.mxu0 %v706
    %725 = vmatprep.subr.bf16.mxu0 0
    %726 = vmatpush1.bf16.msra.mxu0 %v707
    %727 = vmatprep.subr.bf16.mxu0 0
    %728 = vmatpush1.bf16.msra.mxu0 %v708
    %729 = vmatprep.subr.bf16.mxu0 0
    %730 = vmatpush1.bf16.msra.mxu0 %v709
    %731 = vmatprep.subr.bf16.mxu0 0
    %732 = vmatpush1.bf16.msra.mxu0 %v710
    %733 = vmatprep.subr.bf16.mxu0 0
    %734 = vmatpush1.bf16.msra.mxu0 %v711
    %735 = vmatprep.subr.bf16.mxu0 0
    %736 = vmatpush1.bf16.msra.mxu0 %v712
    %737 = vmatprep.subr.bf16.mxu0 0
    %738 = vmatpush1.bf16.msra.mxu0 0
    %739 = vmatprep.subr.bf16.mxu0 0
    %740 = vmatpush1.bf16.msra.mxu0 0
    %741 = vmatprep.subr.bf16.mxu0 0
    %742 = vmatpush1.bf16.msra.mxu0 0
    %743 = vmatprep.subr.bf16.mxu0 0
    %744 = vmatpush1.bf16.msra.mxu0 0
    %745 = vmatprep.subr.bf16.mxu0 0
    %746 = vmatpush1.bf16.msra.mxu0 0
    %747 = vmatprep.subr.bf16.mxu0 0
    %748 = vmatpush1.bf16.msra.mxu0 0
    %749 = vmatprep.subr.bf16.mxu0 0
    %750 = vmatpush1.bf16.msra.mxu0 0
    %751 = vmatprep.subr.bf16.mxu0 0
    %752 = vmatpush1.bf16.msra.mxu0 0
    %753 = vmatprep.mubr.bf16.mxu0 0
    %754 = vmatmul.mubr.bf16.gmra.mrb[0].mxu0 %v644
    %v755 = vpop.f32.mrb[0].mxu0
    %v756 = vadd.f32 %v672, %v755
    %v757 = vpop.f32.mrb[0].mxu0
    %v758 = vpop.f32.mrb[0].mxu0
    %v759 = vadd.f32 %v672, %v758
    %v760 = vpop.f32.mrb[0].mxu0
    %761 = vmatprep.mubr.bf16.mxu0 0
    %762 = vmatmul.mubr.bf16.gmra.mrb[0].mxu0 %v645
    %v763 = vpop.f32.mrb[0].mxu0
    %v764 = vadd.f32 %v672, %v763
    %v765 = vpop.f32.mrb[0].mxu0
    %v766 = vpop.f32.mrb[0].mxu0
    %v767 = vadd.f32 %v672, %v766
    %v768 = vpop.f32.mrb[0].mxu0
    %769 = vmatprep.mubr.bf16.mxu0 0
    %770 = vmatmul.mubr.bf16.gmra.mrb[0].mxu0 %v646
    %v771 = vpop.f32.mrb[0].mxu0
    %v772 = vadd.f32 %v672, %v771
    %v773 = vpop.f32.mrb[0].mxu0
    %v774 = vpop.f32.mrb[0].mxu0
    %v775 = vadd.f32 %v672, %v774
    %v776 = vpop.f32.mrb[0].mxu0
    %777 = vmatprep.mubr.bf16.mxu0 0
    %778 = vmatmul.mubr.bf16.gmra.mrb[0].mxu0 %v647
    %v779 = vpop.f32.mrb[0].mxu0
    %v780 = vadd.f32 %v672, %v779
    %v781 = vpop.f32.mrb[0].mxu0
    %v782 = vpop.f32.mrb[0].mxu0
    %v783 = vadd.f32 %v672, %v782
    %v784 = vpop.f32.mrb[0].mxu0
    %785 = vmatprep.mubr.bf16.mxu0 0
    %786 = vmatmul.mubr.bf16.gmra.mrb[0].mxu0 %v648
    %v787 = vpop.f32.mrb[0].mxu0
    %v788 = vadd.f32 %v672, %v787
    %v789 = vpop.f32.mrb[0].mxu0
    %v790 = vpop.f32.mrb[0].mxu0
    %v791 = vadd.f32 %v672, %v790
    %v792 = vpop.f32.mrb[0].mxu0
    %793 = vmatprep.mubr.bf16.mxu0 0
    %794 = vmatmul.mubr.bf16.gmra.mrb[0].mxu0 %v649
    %v795 = vpop.f32.mrb[0].mxu0
    %v796 = vadd.f32 %v672, %v795
    %v797 = vpop.f32.mrb[0].mxu0
    %v798 = vpop.f32.mrb[0].mxu0
    %v799 = vadd.f32 %v672, %v798
    %v800 = vpop.f32.mrb[0].mxu0
    %801 = vmatprep.mubr.bf16.mxu0 0
    %802 = vmatmul.mubr.bf16.gmra.mrb[0].mxu0 %v650
    %v803 = vpop.f32.mrb[0].mxu0
    %v804 = vadd.f32 %v672, %v803
    %v805 = vpop.f32.mrb[0].mxu0
    %v806 = vpop.f32.mrb[0].mxu0
    %v807 = vadd.f32 %v672, %v806
    %v808 = vpop.f32.mrb[0].mxu0
    %809 = vmatprep.mubr.bf16.mxu0 0
    %810 = vmatmul.mubr.bf16.gmra.mrb[0].mxu0 %v651
    %v811 = vpop.f32.mrb[0].mxu0
    %v812 = vadd.f32 %v672, %v811
    %v813 = vpop.f32.mrb[0].mxu0
    %v814 = vpop.f32.mrb[0].mxu0
    %v815 = vadd.f32 %v672, %v814
    %v816 = vpop.f32.mrb[0].mxu0
    %817 = vdwg.mxu0
    %v818 = vmax.f32 %v756, 0.0
    %v819 = vmax.f32 %v759, 0.0
    %v820 = vmax.f32 %v764, 0.0
    %v821 = vmax.f32 %v767, 0.0
    %v822 = vmax.f32 %v772, 0.0
    %v823 = vmax.f32 %v775, 0.0
    %v824 = vmax.f32 %v780, 0.0
    %v825 = vmax.f32 %v783, 0.0
    %v826 = vmax.f32 %v788, 0.0
    %v827 = vmax.f32 %v791, 0.0
    %v828 = vmax.f32 %v796, 0.0
    %v829 = vmax.f32 %v799, 0.0
    %v830 = vmax.f32 %v804, 0.0
    %v831 = vmax.f32 %v807, 0.0
    %v832 = vmax.f32 %v812, 0.0
    %v833 = vmax.f32 %v815, 0.0
    %v834 = vpack.c.bf16 %v819, %v818
    %v835 = vpack.c.bf16 %v821, %v820
    %v836 = vpack.c.bf16 %v823, %v822
    %v837 = vpack.c.bf16 %v825, %v824
    %v838 = vpack.c.bf16 %v827, %v826
    %v839 = vpack.c.bf16 %v829, %v828
    %v840 = vpack.c.bf16 %v831, %v830
    %v841 = vpack.c.bf16 %v833, %v832
    %v842 = vld [vmem:[#allocation11] sm:$0xff]
    %v843 = vld [vmem:[#allocation11 + $0x8] sm:$0xff]
    %v844 = vld [vmem:[#allocation11 + $0x10] sm:$0xff]
    %v845 = vld [vmem:[#allocation11 + $0x18] sm:$0xff]
    %v846 = vld [vmem:[#allocation11 + $0x20] sm:$0xff]
    %v847 = vld [vmem:[#allocation11 + $0x28] sm:$0xff]
    %v848 = vld [vmem:[#allocation11 + $0x30] sm:$0xff]
    %v849 = vld [vmem:[#allocation11 + $0x38] sm:$0xff]
    %v850 = vld [vmem:[#allocation11 + $0x40] sm:$0xff]
    %v851 = vld [vmem:[#allocation11 + $0x48] sm:$0xff]
    %v852 = vld [vmem:[#allocation11 + $0x50] sm:$0xff]
    %v853 = vld [vmem:[#allocation11 + $0x58] sm:$0xff]
    %v854 = vld [vmem:[#allocation11 + $0x60] sm:$0xff]
    %v855 = vld [vmem:[#allocation11 + $0x68] sm:$0xff]
    %v856 = vld [vmem:[#allocation11 + $0x70] sm:$0xff]
    %v857 = vld [vmem:[#allocation11 + $0x78] sm:$0xff]
    %v858 = vlaneseq
    %v859 = vshrl.u32 %v858, 7
    %v860 = vsub.s32 3, %v859
    %v861 = vrot.slane %v110, %v860
    %v862 = vlaneseq
    %v863 = vshrl.u32 %v862, 7
    %v864 = vsub.s32 3, %v863
    %v865 = vrot.slane %v111, %v864
    %v882 = vunpack.c.l.b16 %v842
    %v883 = vunpack.c.h.b16 %v842
    %v884 = vunpack.c.l.b16 %v843
    %v885 = vunpack.c.h.b16 %v843
    %v886 = vunpack.c.l.b16 %v844
    %v887 = vunpack.c.h.b16 %v844
    %v888 = vunpack.c.l.b16 %v845
    %v889 = vunpack.c.h.b16 %v845
    %v890 = vunpack.c.l.b16 %v846
    %v891 = vunpack.c.h.b16 %v846
    %v892 = vunpack.c.l.b16 %v847
    %v893 = vunpack.c.h.b16 %v847
    %v894 = vunpack.c.l.b16 %v848
    %v895 = vunpack.c.h.b16 %v848
    %v896 = vunpack.c.l.b16 %v849
    %v897 = vunpack.c.h.b16 %v849
    %v898 = vunpack.c.l.b16 %v850
    %v899 = vunpack.c.h.b16 %v850
    %v900 = vunpack.c.l.b16 %v851
    %v901 = vunpack.c.h.b16 %v851
    %v902 = vunpack.c.l.b16 %v852
    %v903 = vunpack.c.h.b16 %v852
    %v904 = vunpack.c.l.b16 %v853
    %v905 = vunpack.c.h.b16 %v853
    %v906 = vunpack.c.l.b16 %v854
    %v907 = vunpack.c.h.b16 %v854
    %v908 = vunpack.c.l.b16 %v855
    %v909 = vunpack.c.h.b16 %v855
    %v910 = vunpack.c.l.b16 %v856
    %v911 = vunpack.c.h.b16 %v856
    %v912 = vunpack.c.l.b16 %v857
    %v913 = vunpack.c.h.b16 %v857
    %v914 = vpack.c.b16 %v884, %v882
    %v915 = vpack.c.b16 %v885, %v883
    %v916 = vpack.c.b16 %v888, %v886
    %v917 = vpack.c.b16 %v889, %v887
    %v918 = vpack.c.b16 %v892, %v890
    %v919 = vpack.c.b16 %v893, %v891
    %v920 = vpack.c.b16 %v896, %v894
    %v921 = vpack.c.b16 %v897, %v895
    %v922 = vpack.c.b16 %v900, %v898
    %v923 = vpack.c.b16 %v901, %v899
    %v924 = vpack.c.b16 %v904, %v902
    %v925 = vpack.c.b16 %v905, %v903
    %v926 = vpack.c.b16 %v908, %v906
    %v927 = vpack.c.b16 %v909, %v907
    %v928 = vpack.c.b16 %v912, %v910
    %v929 = vpack.c.b16 %v913, %v911
    %946 = vmatprep.subr.bf16.mxu0 %v915
    %947 = vmatpush1.bf16.msra.mxu0 %v914
    %948 = vmatprep.subr.bf16.mxu0 %v917
    %949 = vmatpush1.bf16.msra.mxu0 %v916
    %950 = vmatprep.subr.bf16.mxu0 %v919
    %951 = vmatpush1.bf16.msra.mxu0 %v918
    %952 = vmatprep.subr.bf16.mxu0 %v921
    %953 = vmatpush1.bf16.msra.mxu0 %v920
    %954 = vmatprep.subr.bf16.mxu0 %v923
    %955 = vmatpush1.bf16.msra.mxu0 %v922
    %956 = vmatprep.subr.bf16.mxu0 %v925
    %957 = vmatpush1.bf16.msra.mxu0 %v924
    %958 = vmatprep.subr.bf16.mxu0 %v927
    %959 = vmatpush1.bf16.msra.mxu0 %v926
    %960 = vmatprep.subr.bf16.mxu0 %v929
    %961 = vmatpush1.bf16.msra.mxu0 %v928
    %962 = vmatprep.subr.bf16.mxu0 0
    %963 = vmatpush1.bf16.msra.mxu0 0
    %964 = vmatprep.subr.bf16.mxu0 0
    %965 = vmatpush1.bf16.msra.mxu0 0
    %966 = vmatprep.subr.bf16.mxu0 0
    %967 = vmatpush1.bf16.msra.mxu0 0
    %968 = vmatprep.subr.bf16.mxu0 0
    %969 = vmatpush1.bf16.msra.mxu0 0
    %970 = vmatprep.subr.bf16.mxu0 0
    %971 = vmatpush1.bf16.msra.mxu0 0
    %972 = vmatprep.subr.bf16.mxu0 0
    %973 = vmatpush1.bf16.msra.mxu0 0
    %974 = vmatprep.subr.bf16.mxu0 0
    %975 = vmatpush1.bf16.msra.mxu0 0
    %976 = vmatprep.subr.bf16.mxu0 0
    %977 = vmatpush1.bf16.msra.mxu0 0
    %978 = vmatprep.mubr.bf16.mxu0 0
    %979 = vmatmul.mubr.bf16.gmra.mrb[0].mxu0 %v834
    %v980 = vpop.f32.mrb[0].mxu0
    %v981 = vadd.f32 %v861, %v980
    %v982 = vpop.f32.mrb[0].mxu0
    %v983 = vadd.f32 %v865, %v982
    %v984 = vpop.f32.mrb[0].mxu0
    %v985 = vadd.f32 %v861, %v984
    %v986 = vpop.f32.mrb[0].mxu0
    %v987 = vadd.f32 %v865, %v986
    %988 = vmatprep.mubr.bf16.mxu0 0
    %989 = vmatmul.mubr.bf16.gmra.mrb[0].mxu0 %v835
    %v990 = vpop.f32.mrb[0].mxu0
    %v991 = vadd.f32 %v861, %v990
    %v992 = vpop.f32.mrb[0].mxu0
    %v993 = vadd.f32 %v865, %v992
    %v994 = vpop.f32.mrb[0].mxu0
    %v995 = vadd.f32 %v861, %v994
    %v996 = vpop.f32.mrb[0].mxu0
    %v997 = vadd.f32 %v865, %v996
    %998 = vmatprep.mubr.bf16.mxu0 0
    %999 = vmatmul.mubr.bf16.gmra.mrb[0].mxu0 %v836
    %v1000 = vpop.f32.mrb[0].mxu0
    %v1001 = vadd.f32 %v861, %v1000
    %v1002 = vpop.f32.mrb[0].mxu0
    %v1003 = vadd.f32 %v865, %v1002
    %v1004 = vpop.f32.mrb[0].mxu0
    %v1005 = vadd.f32 %v861, %v1004
    %v1006 = vpop.f32.mrb[0].mxu0
    %v1007 = vadd.f32 %v865, %v1006
    %1008 = vmatprep.mubr.bf16.mxu0 0
    %1009 = vmatmul.mubr.bf16.gmra.mrb[0].mxu0 %v837
    %v1010 = vpop.f32.mrb[0].mxu0
    %v1011 = vadd.f32 %v861, %v1010
    %v1012 = vpop.f32.mrb[0].mxu0
    %v1013 = vadd.f32 %v865, %v1012
    %v1014 = vpop.f32.mrb[0].mxu0
    %v1015 = vadd.f32 %v861, %v1014
    %v1016 = vpop.f32.mrb[0].mxu0
    %v1017 = vadd.f32 %v865, %v1016
    %1018 = vmatprep.mubr.bf16.mxu0 0
    %1019 = vmatmul.mubr.bf16.gmra.mrb[0].mxu0 %v838
    %v1020 = vpop.f32.mrb[0].mxu0
    %v1021 = vadd.f32 %v861, %v1020
    %v1022 = vpop.f32.mrb[0].mxu0
    %v1023 = vadd.f32 %v865, %v1022
    %v1024 = vpop.f32.mrb[0].mxu0
    %v1025 = vadd.f32 %v861, %v1024
    %v1026 = vpop.f32.mrb[0].mxu0
    %v1027 = vadd.f32 %v865, %v1026
    %1028 = vmatprep.mubr.bf16.mxu0 0
    %1029 = vmatmul.mubr.bf16.gmra.mrb[0].mxu0 %v839
    %v1030 = vpop.f32.mrb[0].mxu0
    %v1031 = vadd.f32 %v861, %v1030
    %v1032 = vpop.f32.mrb[0].mxu0
    %v1033 = vadd.f32 %v865, %v1032
    %v1034 = vpop.f32.mrb[0].mxu0
    %v1035 = vadd.f32 %v861, %v1034
    %v1036 = vpop.f32.mrb[0].mxu0
    %v1037 = vadd.f32 %v865, %v1036
    %1038 = vmatprep.mubr.bf16.mxu0 0
    %1039 = vmatmul.mubr.bf16.gmra.mrb[0].mxu0 %v840
    %v1040 = vpop.f32.mrb[0].mxu0
    %v1041 = vadd.f32 %v861, %v1040
    %v1042 = vpop.f32.mrb[0].mxu0
    %v1043 = vadd.f32 %v865, %v1042
    %v1044 = vpop.f32.mrb[0].mxu0
    %v1045 = vadd.f32 %v861, %v1044
    %v1046 = vpop.f32.mrb[0].mxu0
    %v1047 = vadd.f32 %v865, %v1046
    %1048 = vmatprep.mubr.bf16.mxu0 0
    %1049 = vmatmul.mubr.bf16.gmra.mrb[0].mxu0 %v841
    %v1050 = vpop.f32.mrb[0].mxu0
    %v1051 = vadd.f32 %v861, %v1050
    %v1052 = vpop.f32.mrb[0].mxu0
    %v1053 = vadd.f32 %v865, %v1052
    %v1054 = vpop.f32.mrb[0].mxu0
    %v1055 = vadd.f32 %v861, %v1054
    %v1056 = vpop.f32.mrb[0].mxu0
    %v1057 = vadd.f32 %v865, %v1056
    %1058 = vdwg.mxu0
    %v1059 = vadd.f32 %v981, %v985
    %v1060 = vadd.f32 %v1059, %v991
    %v1061 = vadd.f32 %v1060, %v995
    %v1062 = vadd.f32 %v1061, %v1001
    %v1063 = vadd.f32 %v1062, %v1005
    %v1064 = vadd.f32 %v1063, %v1011
    %v1065 = vadd.f32 %v1064, %v1015
    %v1066 = vadd.f32 %v1065, %v1021
    %v1067 = vadd.f32 %v1066, %v1025
    %v1068 = vadd.f32 %v1067, %v1031
    %v1069 = vadd.f32 %v1068, %v1035
    %v1070 = vadd.f32 %v1069, %v1041
    %v1071 = vadd.f32 %v1070, %v1045
    %v1072 = vadd.f32 %v1071, %v1051
    %v1073 = vadd.f32 %v1072, %v1055
    %v1074 = vrot.slane %v1073, 4
    %v1075 = vadd.f32 %v1073, %v1074
    %v1076 = vrot.slane %v1075, 2
    %v1077 = vadd.f32 %v1075, %v1076
    %v1078 = vrot.slane %v1077, 1
    %v1079 = vadd.f32 %v1077, %v1078
    %v1080 = vadd.f32 %v983, %v987
    %v1081 = vadd.f32 %v1080, %v993
    %v1082 = vadd.f32 %v1081, %v997
    %v1083 = vadd.f32 %v1082, %v1003
    %v1084 = vadd.f32 %v1083, %v1007
    %v1085 = vadd.f32 %v1084, %v1013
    %v1086 = vadd.f32 %v1085, %v1017
    %v1087 = vadd.f32 %v1086, %v1023
    %v1088 = vadd.f32 %v1087, %v1027
    %v1089 = vadd.f32 %v1088, %v1033
    %v1090 = vadd.f32 %v1089, %v1037
    %v1091 = vadd.f32 %v1090, %v1043
    %v1092 = vadd.f32 %v1091, %v1047
    %v1093 = vadd.f32 %v1092, %v1053
    %v1094 = vadd.f32 %v1093, %v1057
    %v1095 = vrot.slane %v1094, 4
    %v1096 = vadd.f32 %v1094, %v1095
    %v1097 = vrot.slane %v1096, 2
    %v1098 = vadd.f32 %v1096, %v1097
    %v1099 = vrot.slane %v1098, 1
    %v1100 = vadd.f32 %v1098, %v1099
    %v1101 = vrcp.pop 128.0
    %v1102 = vmul.f32 %v1079, %v1101
    %v1103 = vmul.f32 %v1100, %v1101
    %v1104 = vsub.f32 %v981, %v1102
    %v1105 = vsub.f32 %v983, %v1103
    %v1106 = vsub.f32 %v985, %v1102
    %v1107 = vsub.f32 %v987, %v1103
    %v1108 = vsub.f32 %v991, %v1102
    %v1109 = vsub.f32 %v993, %v1103
    %v1110 = vsub.f32 %v995, %v1102
    %v1111 = vsub.f32 %v997, %v1103
    %v1112 = vsub.f32 %v1001, %v1102
    %v1113 = vsub.f32 %v1003, %v1103
    %v1114 = vsub.f32 %v1005, %v1102
    %v1115 = vsub.f32 %v1007, %v1103
    %v1116 = vsub.f32 %v1011, %v1102
    %v1117 = vsub.f32 %v1013, %v1103
    %v1118 = vsub.f32 %v1015, %v1102
    %v1119 = vsub.f32 %v1017, %v1103
    %v1120 = vsub.f32 %v1021, %v1102
    %v1121 = vsub.f32 %v1023, %v1103
    %v1122 = vsub.f32 %v1025, %v1102
    %v1123 = vsub.f32 %v1027, %v1103
    %v1124 = vsub.f32 %v1031, %v1102
    %v1125 = vsub.f32 %v1033, %v1103
    %v1126 = vsub.f32 %v1035, %v1102
    %v1127 = vsub.f32 %v1037, %v1103
    %v1128 = vsub.f32 %v1041, %v1102
    %v1129 = vsub.f32 %v1043, %v1103
    %v1130 = vsub.f32 %v1045, %v1102
    %v1131 = vsub.f32 %v1047, %v1103
    %v1132 = vsub.f32 %v1051, %v1102
    %v1133 = vsub.f32 %v1053, %v1103
    %v1134 = vsub.f32 %v1055, %v1102
    %v1135 = vsub.f32 %v1057, %v1103
    %v1136 = vmul.f32 %v1104, %v1104
    %v1137 = vmul.f32 %v1105, %v1105
    %v1138 = vmul.f32 %v1106, %v1106
    %v1139 = vmul.f32 %v1107, %v1107
    %v1140 = vmul.f32 %v1108, %v1108
    %v1141 = vmul.f32 %v1109, %v1109
    %v1142 = vmul.f32 %v1110, %v1110
    %v1143 = vmul.f32 %v1111, %v1111
    %v1144 = vmul.f32 %v1112, %v1112
    %v1145 = vmul.f32 %v1113, %v1113
    %v1146 = vmul.f32 %v1114, %v1114
    %v1147 = vmul.f32 %v1115, %v1115
    %v1148 = vmul.f32 %v1116, %v1116
    %v1149 = vmul.f32 %v1117, %v1117
    %v1150 = vmul.f32 %v1118, %v1118
    %v1151 = vmul.f32 %v1119, %v1119
    %v1152 = vmul.f32 %v1120, %v1120
    %v1153 = vmul.f32 %v1121, %v1121
    %v1154 = vmul.f32 %v1122, %v1122
    %v1155 = vmul.f32 %v1123, %v1123
    %v1156 = vmul.f32 %v1124, %v1124
    %v1157 = vmul.f32 %v1125, %v1125
    %v1158 = vmul.f32 %v1126, %v1126
    %v1159 = vmul.f32 %v1127, %v1127
    %v1160 = vmul.f32 %v1128, %v1128
    %v1161 = vmul.f32 %v1129, %v1129
    %v1162 = vmul.f32 %v1130, %v1130
    %v1163 = vmul.f32 %v1131, %v1131
    %v1164 = vmul.f32 %v1132, %v1132
    %v1165 = vmul.f32 %v1133, %v1133
    %v1166 = vmul.f32 %v1134, %v1134
    %v1167 = vmul.f32 %v1135, %v1135
    %v1168 = vadd.f32 %v1136, %v1138
    %v1169 = vadd.f32 %v1168, %v1140
    %v1170 = vadd.f32 %v1169, %v1142
    %v1171 = vadd.f32 %v1170, %v1144
    %v1172 = vadd.f32 %v1171, %v1146
    %v1173 = vadd.f32 %v1172, %v1148
    %v1174 = vadd.f32 %v1173, %v1150
    %v1175 = vadd.f32 %v1174, %v1152
    %v1176 = vadd.f32 %v1175, %v1154
    %v1177 = vadd.f32 %v1176, %v1156
    %v1178 = vadd.f32 %v1177, %v1158
    %v1179 = vadd.f32 %v1178, %v1160
    %v1180 = vadd.f32 %v1179, %v1162
    %v1181 = vadd.f32 %v1180, %v1164
    %v1182 = vadd.f32 %v1181, %v1166
    %v1183 = vrot.slane %v1182, 4
    %v1184 = vadd.f32 %v1182, %v1183
    %v1185 = vrot.slane %v1184, 2
    %v1186 = vadd.f32 %v1184, %v1185
    %v1187 = vrot.slane %v1186, 1
    %v1188 = vadd.f32 %v1186, %v1187
    %v1189 = vadd.f32 %v1137, %v1139
    %v1190 = vadd.f32 %v1189, %v1141
    %v1191 = vadd.f32 %v1190, %v1143
    %v1192 = vadd.f32 %v1191, %v1145
    %v1193 = vadd.f32 %v1192, %v1147
    %v1194 = vadd.f32 %v1193, %v1149
    %v1195 = vadd.f32 %v1194, %v1151
    %v1196 = vadd.f32 %v1195, %v1153
    %v1197 = vadd.f32 %v1196, %v1155
    %v1198 = vadd.f32 %v1197, %v1157
    %v1199 = vadd.f32 %v1198, %v1159
    %v1200 = vadd.f32 %v1199, %v1161
    %v1201 = vadd.f32 %v1200, %v1163
    %v1202 = vadd.f32 %v1201, %v1165
    %v1203 = vadd.f32 %v1202, %v1167
    %v1204 = vrot.slane %v1203, 4
    %v1205 = vadd.f32 %v1203, %v1204
    %v1206 = vrot.slane %v1205, 2
    %v1207 = vadd.f32 %v1205, %v1206
    %v1208 = vrot.slane %v1207, 1
    %v1209 = vadd.f32 %v1207, %v1208
    %v1210 = vmul.f32 %v1188, %v1101
    %v1211 = vmul.f32 %v1209, %v1101
    %v1212 = vadd.f32 %v1210, 1e-05
    %v1213 = vadd.f32 %v1211, 1e-05
    %v1214 = vrsqrt.pop %v1212
    %v1215 = vrsqrt.pop %v1213
    %v1216 = vmul.f32 %v1104, %v1214
    %v1217 = vmul.f32 %v1105, %v1215
    %v1218 = vmul.f32 %v1106, %v1214
    %v1219 = vmul.f32 %v1107, %v1215
    %v1220 = vmul.f32 %v1108, %v1214
    %v1221 = vmul.f32 %v1109, %v1215
    %v1222 = vmul.f32 %v1110, %v1214
    %v1223 = vmul.f32 %v1111, %v1215
    %v1224 = vmul.f32 %v1112, %v1214
    %v1225 = vmul.f32 %v1113, %v1215
    %v1226 = vmul.f32 %v1114, %v1214
    %v1227 = vmul.f32 %v1115, %v1215
    %v1228 = vmul.f32 %v1116, %v1214
    %v1229 = vmul.f32 %v1117, %v1215
    %v1230 = vmul.f32 %v1118, %v1214
    %v1231 = vmul.f32 %v1119, %v1215
    %v1232 = vmul.f32 %v1120, %v1214
    %v1233 = vmul.f32 %v1121, %v1215
    %v1234 = vmul.f32 %v1122, %v1214
    %v1235 = vmul.f32 %v1123, %v1215
    %v1236 = vmul.f32 %v1124, %v1214
    %v1237 = vmul.f32 %v1125, %v1215
    %v1238 = vmul.f32 %v1126, %v1214
    %v1239 = vmul.f32 %v1127, %v1215
    %v1240 = vmul.f32 %v1128, %v1214
    %v1241 = vmul.f32 %v1129, %v1215
    %v1242 = vmul.f32 %v1130, %v1214
    %v1243 = vmul.f32 %v1131, %v1215
    %v1244 = vmul.f32 %v1132, %v1214
    %v1245 = vmul.f32 %v1133, %v1215
    %v1246 = vmul.f32 %v1134, %v1214
    %v1247 = vmul.f32 %v1135, %v1215
    %v1248 = vlaneseq
    %v1249 = vshrl.u32 %v1248, 7
    %v1250 = vsub.s32 4, %v1249
    %v1251 = vrot.slane %v110, %v1250
    %v1252 = vlaneseq
    %v1253 = vshrl.u32 %v1252, 7
    %v1254 = vsub.s32 4, %v1253
    %v1255 = vrot.slane %v111, %v1254
    %v1256 = vmul.f32 %v1216, %v1251
    %v1257 = vmul.f32 %v1217, %v1255
    %v1258 = vmul.f32 %v1218, %v1251
    %v1259 = vmul.f32 %v1219, %v1255
    %v1260 = vmul.f32 %v1220, %v1251
    %v1261 = vmul.f32 %v1221, %v1255
    %v1262 = vmul.f32 %v1222, %v1251
    %v1263 = vmul.f32 %v1223, %v1255
    %v1264 = vmul.f32 %v1224, %v1251
    %v1265 = vmul.f32 %v1225, %v1255
    %v1266 = vmul.f32 %v1226, %v1251
    %v1267 = vmul.f32 %v1227, %v1255
    %v1268 = vmul.f32 %v1228, %v1251
    %v1269 = vmul.f32 %v1229, %v1255
    %v1270 = vmul.f32 %v1230, %v1251
    %v1271 = vmul.f32 %v1231, %v1255
    %v1272 = vmul.f32 %v1232, %v1251
    %v1273 = vmul.f32 %v1233, %v1255
    %v1274 = vmul.f32 %v1234, %v1251
    %v1275 = vmul.f32 %v1235, %v1255
    %v1276 = vmul.f32 %v1236, %v1251
    %v1277 = vmul.f32 %v1237, %v1255
    %v1278 = vmul.f32 %v1238, %v1251
    %v1279 = vmul.f32 %v1239, %v1255
    %v1280 = vmul.f32 %v1240, %v1251
    %v1281 = vmul.f32 %v1241, %v1255
    %v1282 = vmul.f32 %v1242, %v1251
    %v1283 = vmul.f32 %v1243, %v1255
    %v1284 = vmul.f32 %v1244, %v1251
    %v1285 = vmul.f32 %v1245, %v1255
    %v1286 = vmul.f32 %v1246, %v1251
    %v1287 = vmul.f32 %v1247, %v1255
    %v1288 = vlaneseq
    %v1289 = vshrl.u32 %v1288, 7
    %v1290 = vsub.s32 5, %v1289
    %v1291 = vrot.slane %v110, %v1290
    %v1292 = vlaneseq
    %v1293 = vshrl.u32 %v1292, 7
    %v1294 = vsub.s32 5, %v1293
    %v1295 = vrot.slane %v111, %v1294
    %v1296 = vadd.f32 %v1256, %v1291
    %v1297 = vadd.f32 %v1257, %v1295
    %v1298 = vadd.f32 %v1258, %v1291
    %v1299 = vadd.f32 %v1259, %v1295
    %v1300 = vadd.f32 %v1260, %v1291
    %v1301 = vadd.f32 %v1261, %v1295
    %v1302 = vadd.f32 %v1262, %v1291
    %v1303 = vadd.f32 %v1263, %v1295
    %v1304 = vadd.f32 %v1264, %v1291
    %v1305 = vadd.f32 %v1265, %v1295
    %v1306 = vadd.f32 %v1266, %v1291
    %v1307 = vadd.f32 %v1267, %v1295
    %v1308 = vadd.f32 %v1268, %v1291
    %v1309 = vadd.f32 %v1269, %v1295
    %v1310 = vadd.f32 %v1270, %v1291
    %v1311 = vadd.f32 %v1271, %v1295
    %v1312 = vadd.f32 %v1272, %v1291
    %v1313 = vadd.f32 %v1273, %v1295
    %v1314 = vadd.f32 %v1274, %v1291
    %v1315 = vadd.f32 %v1275, %v1295
    %v1316 = vadd.f32 %v1276, %v1291
    %v1317 = vadd.f32 %v1277, %v1295
    %v1318 = vadd.f32 %v1278, %v1291
    %v1319 = vadd.f32 %v1279, %v1295
    %v1320 = vadd.f32 %v1280, %v1291
    %v1321 = vadd.f32 %v1281, %v1295
    %v1322 = vadd.f32 %v1282, %v1291
    %v1323 = vadd.f32 %v1283, %v1295
    %v1324 = vadd.f32 %v1284, %v1291
    %v1325 = vadd.f32 %v1285, %v1295
    %v1326 = vadd.f32 %v1286, %v1291
    %v1327 = vadd.f32 %v1287, %v1295
    %v1328 = vld [vmem:[#allocation5] sm:$0xff]
    %v1329 = vld [vmem:[#allocation5 + $0x8] sm:$0xff]
    %v1330 = vld [vmem:[#allocation5 + $0x10] sm:$0xff]
    %v1331 = vld [vmem:[#allocation5 + $0x18] sm:$0xff]
    %v1332 = vld [vmem:[#allocation5 + $0x20] sm:$0xff]
    %v1333 = vld [vmem:[#allocation5 + $0x28] sm:$0xff]
    %v1334 = vld [vmem:[#allocation5 + $0x30] sm:$0xff]
    %v1335 = vld [vmem:[#allocation5 + $0x38] sm:$0xff]
    %v1336 = vld [vmem:[#allocation5 + $0x40] sm:$0xff]
    %v1337 = vld [vmem:[#allocation5 + $0x48] sm:$0xff]
    %v1338 = vld [vmem:[#allocation5 + $0x50] sm:$0xff]
    %v1339 = vld [vmem:[#allocation5 + $0x58] sm:$0xff]
    %v1340 = vld [vmem:[#allocation5 + $0x60] sm:$0xff]
    %v1341 = vld [vmem:[#allocation5 + $0x68] sm:$0xff]
    %v1342 = vld [vmem:[#allocation5 + $0x70] sm:$0xff]
    %v1343 = vld [vmem:[#allocation5 + $0x78] sm:$0xff]
    %v1344 = vmul.f32 %v1297, 0.5
    %v1345 = vmul.f32 %v1299, 0.5
    %v1346 = vmul.f32 %v1301, 0.5
    %v1347 = vmul.f32 %v1303, 0.5
    %v1348 = vmul.f32 %v1305, 0.5
    %v1349 = vmul.f32 %v1307, 0.5
    %v1350 = vmul.f32 %v1309, 0.5
    %v1351 = vmul.f32 %v1311, 0.5
    %v1352 = vmul.f32 %v1313, 0.5
    %v1353 = vmul.f32 %v1315, 0.5
    %v1354 = vmul.f32 %v1317, 0.5
    %v1355 = vmul.f32 %v1319, 0.5
    %v1356 = vmul.f32 %v1321, 0.5
    %v1357 = vmul.f32 %v1323, 0.5
    %v1358 = vmul.f32 %v1325, 0.5
    %v1359 = vmul.f32 %v1327, 0.5
    %v1360 = vmul.f32 %v1344, 1.442695
    %v1361 = vpow.pop %v1360
    %v1362 = vmul.f32 %v1345, 1.442695
    %v1363 = vpow.pop %v1362
    %v1364 = vmul.f32 %v1346, 1.442695
    %v1365 = vpow.pop %v1364
    %v1366 = vmul.f32 %v1347, 1.442695
    %v1367 = vpow.pop %v1366
    %v1368 = vmul.f32 %v1348, 1.442695
    %v1369 = vpow.pop %v1368
    %v1370 = vmul.f32 %v1349, 1.442695
    %v1371 = vpow.pop %v1370
    %v1372 = vmul.f32 %v1350, 1.442695
    %v1373 = vpow.pop %v1372
    %v1374 = vmul.f32 %v1351, 1.442695
    %v1375 = vpow.pop %v1374
    %v1376 = vmul.f32 %v1352, 1.442695
    %v1377 = vpow.pop %v1376
    %v1378 = vmul.f32 %v1353, 1.442695
    %v1379 = vpow.pop %v1378
    %v1380 = vmul.f32 %v1354, 1.442695
    %v1381 = vpow.pop %v1380
    %v1382 = vmul.f32 %v1355, 1.442695
    %v1383 = vpow.pop %v1382
    %v1384 = vmul.f32 %v1356, 1.442695
    %v1385 = vpow.pop %v1384
    %v1386 = vmul.f32 %v1357, 1.442695
    %v1387 = vpow.pop %v1386
    %v1388 = vmul.f32 %v1358, 1.442695
    %v1389 = vpow.pop %v1388
    %v1390 = vmul.f32 %v1359, 1.442695
    %v1391 = vpow.pop %v1390
    %v1392 = vmul.f32 %v1328, %v1361
    %v1393 = vmul.f32 %v1329, %v1363
    %v1394 = vmul.f32 %v1330, %v1365
    %v1395 = vmul.f32 %v1331, %v1367
    %v1396 = vmul.f32 %v1332, %v1369
    %v1397 = vmul.f32 %v1333, %v1371
    %v1398 = vmul.f32 %v1334, %v1373
    %v1399 = vmul.f32 %v1335, %v1375
    %v1400 = vmul.f32 %v1336, %v1377
    %v1401 = vmul.f32 %v1337, %v1379
    %v1402 = vmul.f32 %v1338, %v1381
    %v1403 = vmul.f32 %v1339, %v1383
    %v1404 = vmul.f32 %v1340, %v1385
    %v1405 = vmul.f32 %v1341, %v1387
    %v1406 = vmul.f32 %v1342, %v1389
    %v1407 = vmul.f32 %v1343, %v1391
    %v1408 = vadd.f32 %v1392, %v1296
    %v1409 = vadd.f32 %v1393, %v1298
    %v1410 = vadd.f32 %v1394, %v1300
    %v1411 = vadd.f32 %v1395, %v1302
    %v1412 = vadd.f32 %v1396, %v1304
    %v1413 = vadd.f32 %v1397, %v1306
    %v1414 = vadd.f32 %v1398, %v1308
    %v1415 = vadd.f32 %v1399, %v1310
    %v1416 = vadd.f32 %v1400, %v1312
    %v1417 = vadd.f32 %v1401, %v1314
    %v1418 = vadd.f32 %v1402, %v1316
    %v1419 = vadd.f32 %v1403, %v1318
    %v1420 = vadd.f32 %v1404, %v1320
    %v1421 = vadd.f32 %v1405, %v1322
    %v1422 = vadd.f32 %v1406, %v1324
    %v1423 = vadd.f32 %v1407, %v1326
    %v1424 = vpack.c.bf16 %v1409, %v1408
    %v1425 = vpack.c.bf16 %v1411, %v1410
    %v1426 = vpack.c.bf16 %v1413, %v1412
    %v1427 = vpack.c.bf16 %v1415, %v1414
    %v1428 = vpack.c.bf16 %v1417, %v1416
    %v1429 = vpack.c.bf16 %v1419, %v1418
    %v1430 = vpack.c.bf16 %v1421, %v1420
    %v1431 = vpack.c.bf16 %v1423, %v1422
    %s1432 = scalar_lea.vmem [#allocation10], 128
    %v1433 = vld [vmem:[%s1432] sm:$0xf]
    %v1434 = vld [vmem:[%s1432 + $0x4] sm:$0xf]
    %v1435 = vld [vmem:[%s1432 + $0x8] sm:$0xf]
    %v1436 = vld [vmem:[%s1432 + $0xc] sm:$0xf]
    %v1437 = vld [vmem:[%s1432 + $0x10] sm:$0xf]
    %v1438 = vld [vmem:[%s1432 + $0x14] sm:$0xf]
    %v1439 = vld [vmem:[%s1432 + $0x18] sm:$0xf]
    %v1440 = vld [vmem:[%s1432 + $0x1c] sm:$0xf]
    %v1441 = vld [vmem:[%s1432 + $0x20] sm:$0xf]
    %v1442 = vld [vmem:[%s1432 + $0x24] sm:$0xf]
    %v1443 = vld [vmem:[%s1432 + $0x28] sm:$0xf]
    %v1444 = vld [vmem:[%s1432 + $0x2c] sm:$0xf]
    %v1445 = vld [vmem:[%s1432 + $0x30] sm:$0xf]
    %v1446 = vld [vmem:[%s1432 + $0x34] sm:$0xf]
    %v1447 = vld [vmem:[%s1432 + $0x38] sm:$0xf]
    %v1448 = vld [vmem:[%s1432 + $0x3c] sm:$0xf]
    %v1449 = vlaneseq
    %v1450 = vshrl.u32 %v1449, 7
    %v1451 = vsub.s32 6, %v1450
    %v1452 = vrot.slane %v110, %v1451
    %v1469 = vunpack.c.l.b16 %v1433
    %v1470 = vunpack.c.l.b16 %v1434
    %v1471 = vunpack.c.l.b16 %v1435
    %v1472 = vunpack.c.l.b16 %v1436
    %v1473 = vunpack.c.l.b16 %v1437
    %v1474 = vunpack.c.l.b16 %v1438
    %v1475 = vunpack.c.l.b16 %v1439
    %v1476 = vunpack.c.l.b16 %v1440
    %v1477 = vunpack.c.l.b16 %v1441
    %v1478 = vunpack.c.l.b16 %v1442
    %v1479 = vunpack.c.l.b16 %v1443
    %v1480 = vunpack.c.l.b16 %v1444
    %v1481 = vunpack.c.l.b16 %v1445
    %v1482 = vunpack.c.l.b16 %v1446
    %v1483 = vunpack.c.l.b16 %v1447
    %v1484 = vunpack.c.l.b16 %v1448
    %v1485 = vpack.c.b16 %v1470, %v1469
    %v1486 = vpack.c.b16 %v1472, %v1471
    %v1487 = vpack.c.b16 %v1474, %v1473
    %v1488 = vpack.c.b16 %v1476, %v1475
    %v1489 = vpack.c.b16 %v1478, %v1477
    %v1490 = vpack.c.b16 %v1480, %v1479
    %v1491 = vpack.c.b16 %v1482, %v1481
    %v1492 = vpack.c.b16 %v1484, %v1483
    %1501 = vmatprep.subr.bf16.mxu0 0
    %1502 = vmatpush1.bf16.msra.mxu0 %v1485
    %1503 = vmatprep.subr.bf16.mxu0 0
    %1504 = vmatpush1.bf16.msra.mxu0 %v1486
    %1505 = vmatprep.subr.bf16.mxu0 0
    %1506 = vmatpush1.bf16.msra.mxu0 %v1487
    %1507 = vmatprep.subr.bf16.mxu0 0
    %1508 = vmatpush1.bf16.msra.mxu0 %v1488
    %1509 = vmatprep.subr.bf16.mxu0 0
    %1510 = vmatpush1.bf16.msra.mxu0 %v1489
    %1511 = vmatprep.subr.bf16.mxu0 0
    %1512 = vmatpush1.bf16.msra.mxu0 %v1490
    %1513 = vmatprep.subr.bf16.mxu0 0
    %1514 = vmatpush1.bf16.msra.mxu0 %v1491
    %1515 = vmatprep.subr.bf16.mxu0 0
    %1516 = vmatpush1.bf16.msra.mxu0 %v1492
    %1517 = vmatprep.subr.bf16.mxu0 0
    %1518 = vmatpush1.bf16.msra.mxu0 0
    %1519 = vmatprep.subr.bf16.mxu0 0
    %1520 = vmatpush1.bf16.msra.mxu0 0
    %1521 = vmatprep.subr.bf16.mxu0 0
    %1522 = vmatpush1.bf16.msra.mxu0 0
    %1523 = vmatprep.subr.bf16.mxu0 0
    %1524 = vmatpush1.bf16.msra.mxu0 0
    %1525 = vmatprep.subr.bf16.mxu0 0
    %1526 = vmatpush1.bf16.msra.mxu0 0
    %1527 = vmatprep.subr.bf16.mxu0 0
    %1528 = vmatpush1.bf16.msra.mxu0 0
    %1529 = vmatprep.subr.bf16.mxu0 0
    %1530 = vmatpush1.bf16.msra.mxu0 0
    %1531 = vmatprep.subr.bf16.mxu0 0
    %1532 = vmatpush1.bf16.msra.mxu0 0
    %1533 = vmatprep.mubr.bf16.mxu0 0
    %1534 = vmatmul.mubr.bf16.gmra.mrb[0].mxu0 %v1424
    %v1535 = vpop.f32.mrb[0].mxu0
    %v1536 = vadd.f32 %v1452, %v1535
    %v1537 = vpop.f32.mrb[0].mxu0
    %v1538 = vpop.f32.mrb[0].mxu0
    %v1539 = vadd.f32 %v1452, %v1538
    %v1540 = vpop.f32.mrb[0].mxu0
    %1541 = vmatprep.mubr.bf16.mxu0 0
    %1542 = vmatmul.mubr.bf16.gmra.mrb[0].mxu0 %v1425
    %v1543 = vpop.f32.mrb[0].mxu0
    %v1544 = vadd.f32 %v1452, %v1543
    %v1545 = vpop.f32.mrb[0].mxu0
    %v1546 = vpop.f32.mrb[0].mxu0
    %v1547 = vadd.f32 %v1452, %v1546
    %v1548 = vpop.f32.mrb[0].mxu0
    %1549 = vmatprep.mubr.bf16.mxu0 0
    %1550 = vmatmul.mubr.bf16.gmra.mrb[0].mxu0 %v1426
    %v1551 = vpop.f32.mrb[0].mxu0
    %v1552 = vadd.f32 %v1452, %v1551
    %v1553 = vpop.f32.mrb[0].mxu0
    %v1554 = vpop.f32.mrb[0].mxu0
    %v1555 = vadd.f32 %v1452, %v1554
    %v1556 = vpop.f32.mrb[0].mxu0
    %1557 = vmatprep.mubr.bf16.mxu0 0
    %1558 = vmatmul.mubr.bf16.gmra.mrb[0].mxu0 %v1427
    %v1559 = vpop.f32.mrb[0].mxu0
    %v1560 = vadd.f32 %v1452, %v1559
    %v1561 = vpop.f32.mrb[0].mxu0
    %v1562 = vpop.f32.mrb[0].mxu0
    %v1563 = vadd.f32 %v1452, %v1562
    %v1564 = vpop.f32.mrb[0].mxu0
    %1565 = vmatprep.mubr.bf16.mxu0 0
    %1566 = vmatmul.mubr.bf16.gmra.mrb[0].mxu0 %v1428
    %v1567 = vpop.f32.mrb[0].mxu0
    %v1568 = vadd.f32 %v1452, %v1567
    %v1569 = vpop.f32.mrb[0].mxu0
    %v1570 = vpop.f32.mrb[0].mxu0
    %v1571 = vadd.f32 %v1452, %v1570
    %v1572 = vpop.f32.mrb[0].mxu0
    %1573 = vmatprep.mubr.bf16.mxu0 0
    %1574 = vmatmul.mubr.bf16.gmra.mrb[0].mxu0 %v1429
    %v1575 = vpop.f32.mrb[0].mxu0
    %v1576 = vadd.f32 %v1452, %v1575
    %v1577 = vpop.f32.mrb[0].mxu0
    %v1578 = vpop.f32.mrb[0].mxu0
    %v1579 = vadd.f32 %v1452, %v1578
    %v1580 = vpop.f32.mrb[0].mxu0
    %1581 = vmatprep.mubr.bf16.mxu0 0
    %1582 = vmatmul.mubr.bf16.gmra.mrb[0].mxu0 %v1430
    %v1583 = vpop.f32.mrb[0].mxu0
    %v1584 = vadd.f32 %v1452, %v1583
    %v1585 = vpop.f32.mrb[0].mxu0
    %v1586 = vpop.f32.mrb[0].mxu0
    %v1587 = vadd.f32 %v1452, %v1586
    %v1588 = vpop.f32.mrb[0].mxu0
    %1589 = vmatprep.mubr.bf16.mxu0 0
    %1590 = vmatmul.mubr.bf16.gmra.mrb[0].mxu0 %v1431
    %v1591 = vpop.f32.mrb[0].mxu0
    %v1592 = vadd.f32 %v1452, %v1591
    %v1593 = vpop.f32.mrb[0].mxu0
    %v1594 = vpop.f32.mrb[0].mxu0
    %v1595 = vadd.f32 %v1452, %v1594
    %v1596 = vpop.f32.mrb[0].mxu0
    %1597 = vdwg.mxu0
    %v1598 = vmax.f32 %v1536, 0.0
    %v1599 = vmax.f32 %v1539, 0.0
    %v1600 = vmax.f32 %v1544, 0.0
    %v1601 = vmax.f32 %v1547, 0.0
    %v1602 = vmax.f32 %v1552, 0.0
    %v1603 = vmax.f32 %v1555, 0.0
    %v1604 = vmax.f32 %v1560, 0.0
    %v1605 = vmax.f32 %v1563, 0.0
    %v1606 = vmax.f32 %v1568, 0.0
    %v1607 = vmax.f32 %v1571, 0.0
    %v1608 = vmax.f32 %v1576, 0.0
    %v1609 = vmax.f32 %v1579, 0.0
    %v1610 = vmax.f32 %v1584, 0.0
    %v1611 = vmax.f32 %v1587, 0.0
    %v1612 = vmax.f32 %v1592, 0.0
    %v1613 = vmax.f32 %v1595, 0.0
    %v1614 = vpack.c.bf16 %v1599, %v1598
    %v1615 = vpack.c.bf16 %v1601, %v1600
    %v1616 = vpack.c.bf16 %v1603, %v1602
    %v1617 = vpack.c.bf16 %v1605, %v1604
    %v1618 = vpack.c.bf16 %v1607, %v1606
    %v1619 = vpack.c.bf16 %v1609, %v1608
    %v1620 = vpack.c.bf16 %v1611, %v1610
    %v1621 = vpack.c.bf16 %v1613, %v1612
    %s1622 = scalar_lea.vmem [#allocation10], 192
    %v1623 = vld [vmem:[%s1622] sm:$0xf]
    %v1624 = vld [vmem:[%s1622 + $0x4] sm:$0xf]
    %v1625 = vld [vmem:[%s1622 + $0x8] sm:$0xf]
    %v1626 = vld [vmem:[%s1622 + $0xc] sm:$0xf]
    %v1627 = vld [vmem:[%s1622 + $0x10] sm:$0xf]
    %v1628 = vld [vmem:[%s1622 + $0x14] sm:$0xf]
    %v1629 = vld [vmem:[%s1622 + $0x18] sm:$0xf]
    %v1630 = vld [vmem:[%s1622 + $0x1c] sm:$0xf]
    %v1631 = vld [vmem:[%s1622 + $0x20] sm:$0xf]
    %v1632 = vld [vmem:[%s1622 + $0x24] sm:$0xf]
    %v1633 = vld [vmem:[%s1622 + $0x28] sm:$0xf]
    %v1634 = vld [vmem:[%s1622 + $0x2c] sm:$0xf]
    %v1635 = vld [vmem:[%s1622 + $0x30] sm:$0xf]
    %v1636 = vld [vmem:[%s1622 + $0x34] sm:$0xf]
    %v1637 = vld [vmem:[%s1622 + $0x38] sm:$0xf]
    %v1638 = vld [vmem:[%s1622 + $0x3c] sm:$0xf]
    %v1639 = vlaneseq
    %v1640 = vshrl.u32 %v1639, 7
    %v1641 = vsub.s32 7, %v1640
    %v1642 = vrot.slane %v110, %v1641
    %v1659 = vunpack.c.l.b16 %v1623
    %v1660 = vunpack.c.l.b16 %v1624
    %v1661 = vunpack.c.l.b16 %v1625
    %v1662 = vunpack.c.l.b16 %v1626
    %v1663 = vunpack.c.l.b16 %v1627
    %v1664 = vunpack.c.l.b16 %v1628
    %v1665 = vunpack.c.l.b16 %v1629
    %v1666 = vunpack.c.l.b16 %v1630
    %v1667 = vunpack.c.l.b16 %v1631
    %v1668 = vunpack.c.l.b16 %v1632
    %v1669 = vunpack.c.l.b16 %v1633
    %v1670 = vunpack.c.l.b16 %v1634
    %v1671 = vunpack.c.l.b16 %v1635
    %v1672 = vunpack.c.l.b16 %v1636
    %v1673 = vunpack.c.l.b16 %v1637
    %v1674 = vunpack.c.l.b16 %v1638
    %v1675 = vpack.c.b16 %v1660, %v1659
    %v1676 = vpack.c.b16 %v1662, %v1661
    %v1677 = vpack.c.b16 %v1664, %v1663
    %v1678 = vpack.c.b16 %v1666, %v1665
    %v1679 = vpack.c.b16 %v1668, %v1667
    %v1680 = vpack.c.b16 %v1670, %v1669
    %v1681 = vpack.c.b16 %v1672, %v1671
    %v1682 = vpack.c.b16 %v1674, %v1673
    %1691 = vmatprep.subr.bf16.mxu0 0
    %1692 = vmatpush1.bf16.msra.mxu0 %v1675
    %1693 = vmatprep.subr.bf16.mxu0 0
    %1694 = vmatpush1.bf16.msra.mxu0 %v1676
    %1695 = vmatprep.subr.bf16.mxu0 0
    %1696 = vmatpush1.bf16.msra.mxu0 %v1677
    %1697 = vmatprep.subr.bf16.mxu0 0
    %1698 = vmatpush1.bf16.msra.mxu0 %v1678
    %1699 = vmatprep.subr.bf16.mxu0 0
    %1700 = vmatpush1.bf16.msra.mxu0 %v1679
    %1701 = vmatprep.subr.bf16.mxu0 0
    %1702 = vmatpush1.bf16.msra.mxu0 %v1680
    %1703 = vmatprep.subr.bf16.mxu0 0
    %1704 = vmatpush1.bf16.msra.mxu0 %v1681
    %1705 = vmatprep.subr.bf16.mxu0 0
    %1706 = vmatpush1.bf16.msra.mxu0 %v1682
    %1707 = vmatprep.subr.bf16.mxu0 0
    %1708 = vmatpush1.bf16.msra.mxu0 0
    %1709 = vmatprep.subr.bf16.mxu0 0
    %1710 = vmatpush1.bf16.msra.mxu0 0
    %1711 = vmatprep.subr.bf16.mxu0 0
    %1712 = vmatpush1.bf16.msra.mxu0 0
    %1713 = vmatprep.subr.bf16.mxu0 0
    %1714 = vmatpush1.bf16.msra.mxu0 0
    %1715 = vmatprep.subr.bf16.mxu0 0
    %1716 = vmatpush1.bf16.msra.mxu0 0
    %1717 = vmatprep.subr.bf16.mxu0 0
    %1718 = vmatpush1.bf16.msra.mxu0 0
    %1719 = vmatprep.subr.bf16.mxu0 0
    %1720 = vmatpush1.bf16.msra.mxu0 0
    %1721 = vmatprep.subr.bf16.mxu0 0
    %1722 = vmatpush1.bf16.msra.mxu0 0
    %1723 = vmatprep.mubr.bf16.mxu0 0
    %1724 = vmatmul.mubr.bf16.gmra.mrb[0].mxu0 %v1614
    %v1725 = vpop.f32.mrb[0].mxu0
    %v1726 = vadd.f32 %v1642, %v1725
    %v1727 = vpop.f32.mrb[0].mxu0
    %v1728 = vpop.f32.mrb[0].mxu0
    %v1729 = vadd.f32 %v1642, %v1728
    %v1730 = vpop.f32.mrb[0].mxu0
    %1731 = vmatprep.mubr.bf16.mxu0 0
    %1732 = vmatmul.mubr.bf16.gmra.mrb[0].mxu0 %v1615
    %v1733 = vpop.f32.mrb[0].mxu0
    %v1734 = vadd.f32 %v1642, %v1733
    %v1735 = vpop.f32.mrb[0].mxu0
    %v1736 = vpop.f32.mrb[0].mxu0
    %v1737 = vadd.f32 %v1642, %v1736
    %v1738 = vpop.f32.mrb[0].mxu0
    %1739 = vmatprep.mubr.bf16.mxu0 0
    %1740 = vmatmul.mubr.bf16.gmra.mrb[0].mxu0 %v1616
    %v1741 = vpop.f32.mrb[0].mxu0
    %v1742 = vadd.f32 %v1642, %v1741
    %v1743 = vpop.f32.mrb[0].mxu0
    %v1744 = vpop.f32.mrb[0].mxu0
    %v1745 = vadd.f32 %v1642, %v1744
    %v1746 = vpop.f32.mrb[0].mxu0
    %1747 = vmatprep.mubr.bf16.mxu0 0
    %1748 = vmatmul.mubr.bf16.gmra.mrb[0].mxu0 %v1617
    %v1749 = vpop.f32.mrb[0].mxu0
    %v1750 = vadd.f32 %v1642, %v1749
    %v1751 = vpop.f32.mrb[0].mxu0
    %v1752 = vpop.f32.mrb[0].mxu0
    %v1753 = vadd.f32 %v1642, %v1752
    %v1754 = vpop.f32.mrb[0].mxu0
    %1755 = vmatprep.mubr.bf16.mxu0 0
    %1756 = vmatmul.mubr.bf16.gmra.mrb[0].mxu0 %v1618
    %v1757 = vpop.f32.mrb[0].mxu0
    %v1758 = vadd.f32 %v1642, %v1757
    %v1759 = vpop.f32.mrb[0].mxu0
    %v1760 = vpop.f32.mrb[0].mxu0
    %v1761 = vadd.f32 %v1642, %v1760
    %v1762 = vpop.f32.mrb[0].mxu0
    %1763 = vmatprep.mubr.bf16.mxu0 0
    %1764 = vmatmul.mubr.bf16.gmra.mrb[0].mxu0 %v1619
    %v1765 = vpop.f32.mrb[0].mxu0
    %v1766 = vadd.f32 %v1642, %v1765
    %v1767 = vpop.f32.mrb[0].mxu0
    %v1768 = vpop.f32.mrb[0].mxu0
    %v1769 = vadd.f32 %v1642, %v1768
    %v1770 = vpop.f32.mrb[0].mxu0
    %1771 = vmatprep.mubr.bf16.mxu0 0
    %1772 = vmatmul.mubr.bf16.gmra.mrb[0].mxu0 %v1620
    %v1773 = vpop.f32.mrb[0].mxu0
    %v1774 = vadd.f32 %v1642, %v1773
    %v1775 = vpop.f32.mrb[0].mxu0
    %v1776 = vpop.f32.mrb[0].mxu0
    %v1777 = vadd.f32 %v1642, %v1776
    %v1778 = vpop.f32.mrb[0].mxu0
    %1779 = vmatprep.mubr.bf16.mxu0 0
    %1780 = vmatmul.mubr.bf16.gmra.mrb[0].mxu0 %v1621
    %v1781 = vpop.f32.mrb[0].mxu0
    %v1782 = vadd.f32 %v1642, %v1781
    %v1783 = vpop.f32.mrb[0].mxu0
    %v1784 = vpop.f32.mrb[0].mxu0
    %v1785 = vadd.f32 %v1642, %v1784
    %v1786 = vpop.f32.mrb[0].mxu0
    %1787 = vdwg.mxu0
    %v1788 = vmax.f32 %v1726, 0.0
    %v1789 = vmax.f32 %v1729, 0.0
    %v1790 = vmax.f32 %v1734, 0.0
    %v1791 = vmax.f32 %v1737, 0.0
    %v1792 = vmax.f32 %v1742, 0.0
    %v1793 = vmax.f32 %v1745, 0.0
    %v1794 = vmax.f32 %v1750, 0.0
    %v1795 = vmax.f32 %v1753, 0.0
    %v1796 = vmax.f32 %v1758, 0.0
    %v1797 = vmax.f32 %v1761, 0.0
    %v1798 = vmax.f32 %v1766, 0.0
    %v1799 = vmax.f32 %v1769, 0.0
    %v1800 = vmax.f32 %v1774, 0.0
    %v1801 = vmax.f32 %v1777, 0.0
    %v1802 = vmax.f32 %v1782, 0.0
    %v1803 = vmax.f32 %v1785, 0.0
    %v1804 = vpack.c.bf16 %v1789, %v1788
    %v1805 = vpack.c.bf16 %v1791, %v1790
    %v1806 = vpack.c.bf16 %v1793, %v1792
    %v1807 = vpack.c.bf16 %v1795, %v1794
    %v1808 = vpack.c.bf16 %v1797, %v1796
    %v1809 = vpack.c.bf16 %v1799, %v1798
    %v1810 = vpack.c.bf16 %v1801, %v1800
    %v1811 = vpack.c.bf16 %v1803, %v1802
    %s1812 = scalar_lea.vmem [#allocation10], 256
    %v1813 = vld [vmem:[%s1812] sm:$0xf]
    %v1814 = vld [vmem:[%s1812 + $0x4] sm:$0xf]
    %v1815 = vld [vmem:[%s1812 + $0x8] sm:$0xf]
    %v1816 = vld [vmem:[%s1812 + $0xc] sm:$0xf]
    %v1817 = vld [vmem:[%s1812 + $0x10] sm:$0xf]
    %v1818 = vld [vmem:[%s1812 + $0x14] sm:$0xf]
    %v1819 = vld [vmem:[%s1812 + $0x18] sm:$0xf]
    %v1820 = vld [vmem:[%s1812 + $0x1c] sm:$0xf]
    %v1821 = vld [vmem:[%s1812 + $0x20] sm:$0xf]
    %v1822 = vld [vmem:[%s1812 + $0x24] sm:$0xf]
    %v1823 = vld [vmem:[%s1812 + $0x28] sm:$0xf]
    %v1824 = vld [vmem:[%s1812 + $0x2c] sm:$0xf]
    %v1825 = vld [vmem:[%s1812 + $0x30] sm:$0xf]
    %v1826 = vld [vmem:[%s1812 + $0x34] sm:$0xf]
    %v1827 = vld [vmem:[%s1812 + $0x38] sm:$0xf]
    %v1828 = vld [vmem:[%s1812 + $0x3c] sm:$0xf]
    %v1829 = vlaneseq
    %v1830 = vshrl.u32 %v1829, 7
    %v1831 = vsub.s32 0, %v1830
    %v1832 = vrot.slane %v112, %v1831
    %v1849 = vunpack.c.l.b16 %v1813
    %v1850 = vunpack.c.l.b16 %v1814
    %v1851 = vunpack.c.l.b16 %v1815
    %v1852 = vunpack.c.l.b16 %v1816
    %v1853 = vunpack.c.l.b16 %v1817
    %v1854 = vunpack.c.l.b16 %v1818
    %v1855 = vunpack.c.l.b16 %v1819
    %v1856 = vunpack.c.l.b16 %v1820
    %v1857 = vunpack.c.l.b16 %v1821
    %v1858 = vunpack.c.l.b16 %v1822
    %v1859 = vunpack.c.l.b16 %v1823
    %v1860 = vunpack.c.l.b16 %v1824
    %v1861 = vunpack.c.l.b16 %v1825
    %v1862 = vunpack.c.l.b16 %v1826
    %v1863 = vunpack.c.l.b16 %v1827
    %v1864 = vunpack.c.l.b16 %v1828
    %v1865 = vpack.c.b16 %v1850, %v1849
    %v1866 = vpack.c.b16 %v1852, %v1851
    %v1867 = vpack.c.b16 %v1854, %v1853
    %v1868 = vpack.c.b16 %v1856, %v1855
    %v1869 = vpack.c.b16 %v1858, %v1857
    %v1870 = vpack.c.b16 %v1860, %v1859
    %v1871 = vpack.c.b16 %v1862, %v1861
    %v1872 = vpack.c.b16 %v1864, %v1863
    %1881 = vmatprep.subr.bf16.mxu0 0
    %1882 = vmatpush1.bf16.msra.mxu0 %v1865
    %1883 = vmatprep.subr.bf16.mxu0 0
    %1884 = vmatpush1.bf16.msra.mxu0 %v1866
    %1885 = vmatprep.subr.bf16.mxu0 0
    %1886 = vmatpush1.bf16.msra.mxu0 %v1867
    %1887 = vmatprep.subr.bf16.mxu0 0
    %1888 = vmatpush1.bf16.msra.mxu0 %v1868
    %1889 = vmatprep.subr.bf16.mxu0 0
    %1890 = vmatpush1.bf16.msra.mxu0 %v1869
    %1891 = vmatprep.subr.bf16.mxu0 0
    %1892 = vmatpush1.bf16.msra.mxu0 %v1870
    %1893 = vmatprep.subr.bf16.mxu0 0
    %1894 = vmatpush1.bf16.msra.mxu0 %v1871
    %1895 = vmatprep.subr.bf16.mxu0 0
    %1896 = vmatpush1.bf16.msra.mxu0 %v1872
    %1897 = vmatprep.subr.bf16.mxu0 0
    %1898 = vmatpush1.bf16.msra.mxu0 0
    %1899 = vmatprep.subr.bf16.mxu0 0
    %1900 = vmatpush1.bf16.msra.mxu0 0
    %1901 = vmatprep.subr.bf16.mxu0 0
    %1902 = vmatpush1.bf16.msra.mxu0 0
    %1903 = vmatprep.subr.bf16.mxu0 0
    %1904 = vmatpush1.bf16.msra.mxu0 0
    %1905 = vmatprep.subr.bf16.mxu0 0
    %1906 = vmatpush1.bf16.msra.mxu0 0
    %1907 = vmatprep.subr.bf16.mxu0 0
    %1908 = vmatpush1.bf16.msra.mxu0 0
    %1909 = vmatprep.subr.bf16.mxu0 0
    %1910 = vmatpush1.bf16.msra.mxu0 0
    %1911 = vmatprep.subr.bf16.mxu0 0
    %1912 = vmatpush1.bf16.msra.mxu0 0
    %1913 = vmatprep.mubr.bf16.mxu0 0
    %1914 = vmatmul.mubr.bf16.gmra.mrb[0].mxu0 %v1804
    %v1915 = vpop.f32.mrb[0].mxu0
    %v1916 = vadd.f32 %v1832, %v1915
    %v1917 = vpop.f32.mrb[0].mxu0
    %v1918 = vpop.f32.mrb[0].mxu0
    %v1919 = vadd.f32 %v1832, %v1918
    %v1920 = vpop.f32.mrb[0].mxu0
    %1921 = vmatprep.mubr.bf16.mxu0 0
    %1922 = vmatmul.mubr.bf16.gmra.mrb[0].mxu0 %v1805
    %v1923 = vpop.f32.mrb[0].mxu0
    %v1924 = vadd.f32 %v1832, %v1923
    %v1925 = vpop.f32.mrb[0].mxu0
    %v1926 = vpop.f32.mrb[0].mxu0
    %v1927 = vadd.f32 %v1832, %v1926
    %v1928 = vpop.f32.mrb[0].mxu0
    %1929 = vmatprep.mubr.bf16.mxu0 0
    %1930 = vmatmul.mubr.bf16.gmra.mrb[0].mxu0 %v1806
    %v1931 = vpop.f32.mrb[0].mxu0
    %v1932 = vadd.f32 %v1832, %v1931
    %v1933 = vpop.f32.mrb[0].mxu0
    %v1934 = vpop.f32.mrb[0].mxu0
    %v1935 = vadd.f32 %v1832, %v1934
    %v1936 = vpop.f32.mrb[0].mxu0
    %1937 = vmatprep.mubr.bf16.mxu0 0
    %1938 = vmatmul.mubr.bf16.gmra.mrb[0].mxu0 %v1807
    %v1939 = vpop.f32.mrb[0].mxu0
    %v1940 = vadd.f32 %v1832, %v1939
    %v1941 = vpop.f32.mrb[0].mxu0
    %v1942 = vpop.f32.mrb[0].mxu0
    %v1943 = vadd.f32 %v1832, %v1942
    %v1944 = vpop.f32.mrb[0].mxu0
    %1945 = vmatprep.mubr.bf16.mxu0 0
    %1946 = vmatmul.mubr.bf16.gmra.mrb[0].mxu0 %v1808
    %v1947 = vpop.f32.mrb[0].mxu0
    %v1948 = vadd.f32 %v1832, %v1947
    %v1949 = vpop.f32.mrb[0].mxu0
    %v1950 = vpop.f32.mrb[0].mxu0
    %v1951 = vadd.f32 %v1832, %v1950
    %v1952 = vpop.f32.mrb[0].mxu0
    %1953 = vmatprep.mubr.bf16.mxu0 0
    %1954 = vmatmul.mubr.bf16.gmra.mrb[0].mxu0 %v1809
    %v1955 = vpop.f32.mrb[0].mxu0
    %v1956 = vadd.f32 %v1832, %v1955
    %v1957 = vpop.f32.mrb[0].mxu0
    %v1958 = vpop.f32.mrb[0].mxu0
    %v1959 = vadd.f32 %v1832, %v1958
    %v1960 = vpop.f32.mrb[0].mxu0
    %1961 = vmatprep.mubr.bf16.mxu0 0
    %1962 = vmatmul.mubr.bf16.gmra.mrb[0].mxu0 %v1810
    %v1963 = vpop.f32.mrb[0].mxu0
    %v1964 = vadd.f32 %v1832, %v1963
    %v1965 = vpop.f32.mrb[0].mxu0
    %v1966 = vpop.f32.mrb[0].mxu0
    %v1967 = vadd.f32 %v1832, %v1966
    %v1968 = vpop.f32.mrb[0].mxu0
    %1969 = vmatprep.mubr.bf16.mxu0 0
    %1970 = vmatmul.mubr.bf16.gmra.mrb[0].mxu0 %v1811
    %v1971 = vpop.f32.mrb[0].mxu0
    %v1972 = vadd.f32 %v1832, %v1971
    %v1973 = vpop.f32.mrb[0].mxu0
    %v1974 = vpop.f32.mrb[0].mxu0
    %v1975 = vadd.f32 %v1832, %v1974
    %v1976 = vpop.f32.mrb[0].mxu0
    %1977 = vdwg.mxu0
    %v1978 = vmax.f32 %v1916, 0.0
    %v1979 = vmax.f32 %v1919, 0.0
    %v1980 = vmax.f32 %v1924, 0.0
    %v1981 = vmax.f32 %v1927, 0.0
    %v1982 = vmax.f32 %v1932, 0.0
    %v1983 = vmax.f32 %v1935, 0.0
    %v1984 = vmax.f32 %v1940, 0.0
    %v1985 = vmax.f32 %v1943, 0.0
    %v1986 = vmax.f32 %v1948, 0.0
    %v1987 = vmax.f32 %v1951, 0.0
    %v1988 = vmax.f32 %v1956, 0.0
    %v1989 = vmax.f32 %v1959, 0.0
    %v1990 = vmax.f32 %v1964, 0.0
    %v1991 = vmax.f32 %v1967, 0.0
    %v1992 = vmax.f32 %v1972, 0.0
    %v1993 = vmax.f32 %v1975, 0.0
    %v1994 = vpack.c.bf16 %v1979, %v1978
    %v1995 = vpack.c.bf16 %v1981, %v1980
    %v1996 = vpack.c.bf16 %v1983, %v1982
    %v1997 = vpack.c.bf16 %v1985, %v1984
    %v1998 = vpack.c.bf16 %v1987, %v1986
    %v1999 = vpack.c.bf16 %v1989, %v1988
    %v2000 = vpack.c.bf16 %v1991, %v1990
    %v2001 = vpack.c.bf16 %v1993, %v1992
    %s2002 = scalar_lea.vmem [#allocation11], 128
    %v2003 = vld [vmem:[%s2002] sm:$0xff]
    %v2004 = vld [vmem:[%s2002 + $0x8] sm:$0xff]
    %v2005 = vld [vmem:[%s2002 + $0x10] sm:$0xff]
    %v2006 = vld [vmem:[%s2002 + $0x18] sm:$0xff]
    %v2007 = vld [vmem:[%s2002 + $0x20] sm:$0xff]
    %v2008 = vld [vmem:[%s2002 + $0x28] sm:$0xff]
    %v2009 = vld [vmem:[%s2002 + $0x30] sm:$0xff]
    %v2010 = vld [vmem:[%s2002 + $0x38] sm:$0xff]
    %v2011 = vld [vmem:[%s2002 + $0x40] sm:$0xff]
    %v2012 = vld [vmem:[%s2002 + $0x48] sm:$0xff]
    %v2013 = vld [vmem:[%s2002 + $0x50] sm:$0xff]
    %v2014 = vld [vmem:[%s2002 + $0x58] sm:$0xff]
    %v2015 = vld [vmem:[%s2002 + $0x60] sm:$0xff]
    %v2016 = vld [vmem:[%s2002 + $0x68] sm:$0xff]
    %v2017 = vld [vmem:[%s2002 + $0x70] sm:$0xff]
    %v2018 = vld [vmem:[%s2002 + $0x78] sm:$0xff]
    %v2019 = vlaneseq
    %v2020 = vshrl.u32 %v2019, 7
    %v2021 = vsub.s32 1, %v2020
    %v2022 = vrot.slane %v112, %v2021
    %v2023 = vlaneseq
    %v2024 = vshrl.u32 %v2023, 7
    %v2025 = vsub.s32 1, %v2024
    %v2026 = vrot.slane %v113, %v2025
    %v2043 = vunpack.c.l.b16 %v2003
    %v2044 = vunpack.c.h.b16 %v2003
    %v2045 = vunpack.c.l.b16 %v2004
    %v2046 = vunpack.c.h.b16 %v2004
    %v2047 = vunpack.c.l.b16 %v2005
    %v2048 = vunpack.c.h.b16 %v2005
    %v2049 = vunpack.c.l.b16 %v2006
    %v2050 = vunpack.c.h.b16 %v2006
    %v2051 = vunpack.c.l.b16 %v2007
    %v2052 = vunpack.c.h.b16 %v2007
    %v2053 = vunpack.c.l.b16 %v2008
    %v2054 = vunpack.c.h.b16 %v2008
    %v2055 = vunpack.c.l.b16 %v2009
    %v2056 = vunpack.c.h.b16 %v2009
    %v2057 = vunpack.c.l.b16 %v2010
    %v2058 = vunpack.c.h.b16 %v2010
    %v2059 = vunpack.c.l.b16 %v2011
    %v2060 = vunpack.c.h.b16 %v2011
    %v2061 = vunpack.c.l.b16 %v2012
    %v2062 = vunpack.c.h.b16 %v2012
    %v2063 = vunpack.c.l.b16 %v2013
    %v2064 = vunpack.c.h.b16 %v2013
    %v2065 = vunpack.c.l.b16 %v2014
    %v2066 = vunpack.c.h.b16 %v2014
    %v2067 = vunpack.c.l.b16 %v2015
    %v2068 = vunpack.c.h.b16 %v2015
    %v2069 = vunpack.c.l.b16 %v2016
    %v2070 = vunpack.c.h.b16 %v2016
    %v2071 = vunpack.c.l.b16 %v2017
    %v2072 = vunpack.c.h.b16 %v2017
    %v2073 = vunpack.c.l.b16 %v2018
    %v2074 = vunpack.c.h.b16 %v2018
    %v2075 = vpack.c.b16 %v2045, %v2043
    %v2076 = vpack.c.b16 %v2046, %v2044
    %v2077 = vpack.c.b16 %v2049, %v2047
    %v2078 = vpack.c.b16 %v2050, %v2048
    %v2079 = vpack.c.b16 %v2053, %v2051
    %v2080 = vpack.c.b16 %v2054, %v2052
    %v2081 = vpack.c.b16 %v2057, %v2055
    %v2082 = vpack.c.b16 %v2058, %v2056
    %v2083 = vpack.c.b16 %v2061, %v2059
    %v2084 = vpack.c.b16 %v2062, %v2060
    %v2085 = vpack.c.b16 %v2065, %v2063
    %v2086 = vpack.c.b16 %v2066, %v2064
    %v2087 = vpack.c.b16 %v2069, %v2067
    %v2088 = vpack.c.b16 %v2070, %v2068
    %v2089 = vpack.c.b16 %v2073, %v2071
    %v2090 = vpack.c.b16 %v2074, %v2072
    %2107 = vmatprep.subr.bf16.mxu0 %v2076
    %2108 = vmatpush1.bf16.msra.mxu0 %v2075
    %2109 = vmatprep.subr.bf16.mxu0 %v2078
    %2110 = vmatpush1.bf16.msra.mxu0 %v2077
    %2111 = vmatprep.subr.bf16.mxu0 %v2080
    %2112 = vmatpush1.bf16.msra.mxu0 %v2079
    %2113 = vmatprep.subr.bf16.mxu0 %v2082
    %2114 = vmatpush1.bf16.msra.mxu0 %v2081
    %2115 = vmatprep.subr.bf16.mxu0 %v2084
    %2116 = vmatpush1.bf16.msra.mxu0 %v2083
    %2117 = vmatprep.subr.bf16.mxu0 %v2086
    %2118 = vmatpush1.bf16.msra.mxu0 %v2085
    %2119 = vmatprep.subr.bf16.mxu0 %v2088
    %2120 = vmatpush1.bf16.msra.mxu0 %v2087
    %2121 = vmatprep.subr.bf16.mxu0 %v2090
    %2122 = vmatpush1.bf16.msra.mxu0 %v2089
    %2123 = vmatprep.subr.bf16.mxu0 0
    %2124 = vmatpush1.bf16.msra.mxu0 0
    %2125 = vmatprep.subr.bf16.mxu0 0
    %2126 = vmatpush1.bf16.msra.mxu0 0
    %2127 = vmatprep.subr.bf16.mxu0 0
    %2128 = vmatpush1.bf16.msra.mxu0 0
    %2129 = vmatprep.subr.bf16.mxu0 0
    %2130 = vmatpush1.bf16.msra.mxu0 0
    %2131 = vmatprep.subr.bf16.mxu0 0
    %2132 = vmatpush1.bf16.msra.mxu0 0
    %2133 = vmatprep.subr.bf16.mxu0 0
    %2134 = vmatpush1.bf16.msra.mxu0 0
    %2135 = vmatprep.subr.bf16.mxu0 0
    %2136 = vmatpush1.bf16.msra.mxu0 0
    %2137 = vmatprep.subr.bf16.mxu0 0
    %2138 = vmatpush1.bf16.msra.mxu0 0
    %2139 = vmatprep.mubr.bf16.mxu0 0
    %2140 = vmatmul.mubr.bf16.gmra.mrb[0].mxu0 %v1994
    %v2141 = vpop.f32.mrb[0].mxu0
    %v2142 = vadd.f32 %v2022, %v2141
    %v2143 = vpop.f32.mrb[0].mxu0
    %v2144 = vadd.f32 %v2026, %v2143
    %v2145 = vpop.f32.mrb[0].mxu0
    %v2146 = vadd.f32 %v2022, %v2145
    %v2147 = vpop.f32.mrb[0].mxu0
    %v2148 = vadd.f32 %v2026, %v2147
    %2149 = vmatprep.mubr.bf16.mxu0 0
    %2150 = vmatmul.mubr.bf16.gmra.mrb[0].mxu0 %v1995
    %v2151 = vpop.f32.mrb[0].mxu0
    %v2152 = vadd.f32 %v2022, %v2151
    %v2153 = vpop.f32.mrb[0].mxu0
    %v2154 = vadd.f32 %v2026, %v2153
    %v2155 = vpop.f32.mrb[0].mxu0
    %v2156 = vadd.f32 %v2022, %v2155
    %v2157 = vpop.f32.mrb[0].mxu0
    %v2158 = vadd.f32 %v2026, %v2157
    %2159 = vmatprep.mubr.bf16.mxu0 0
    %2160 = vmatmul.mubr.bf16.gmra.mrb[0].mxu0 %v1996
    %v2161 = vpop.f32.mrb[0].mxu0
    %v2162 = vadd.f32 %v2022, %v2161
    %v2163 = vpop.f32.mrb[0].mxu0
    %v2164 = vadd.f32 %v2026, %v2163
    %v2165 = vpop.f32.mrb[0].mxu0
    %v2166 = vadd.f32 %v2022, %v2165
    %v2167 = vpop.f32.mrb[0].mxu0
    %v2168 = vadd.f32 %v2026, %v2167
    %2169 = vmatprep.mubr.bf16.mxu0 0
    %2170 = vmatmul.mubr.bf16.gmra.mrb[0].mxu0 %v1997
    %v2171 = vpop.f32.mrb[0].mxu0
    %v2172 = vadd.f32 %v2022, %v2171
    %v2173 = vpop.f32.mrb[0].mxu0
    %v2174 = vadd.f32 %v2026, %v2173
    %v2175 = vpop.f32.mrb[0].mxu0
    %v2176 = vadd.f32 %v2022, %v2175
    %v2177 = vpop.f32.mrb[0].mxu0
    %v2178 = vadd.f32 %v2026, %v2177
    %2179 = vmatprep.mubr.bf16.mxu0 0
    %2180 = vmatmul.mubr.bf16.gmra.mrb[0].mxu0 %v1998
    %v2181 = vpop.f32.mrb[0].mxu0
    %v2182 = vadd.f32 %v2022, %v2181
    %v2183 = vpop.f32.mrb[0].mxu0
    %v2184 = vadd.f32 %v2026, %v2183
    %v2185 = vpop.f32.mrb[0].mxu0
    %v2186 = vadd.f32 %v2022, %v2185
    %v2187 = vpop.f32.mrb[0].mxu0
    %v2188 = vadd.f32 %v2026, %v2187
    %2189 = vmatprep.mubr.bf16.mxu0 0
    %2190 = vmatmul.mubr.bf16.gmra.mrb[0].mxu0 %v1999
    %v2191 = vpop.f32.mrb[0].mxu0
    %v2192 = vadd.f32 %v2022, %v2191
    %v2193 = vpop.f32.mrb[0].mxu0
    %v2194 = vadd.f32 %v2026, %v2193
    %v2195 = vpop.f32.mrb[0].mxu0
    %v2196 = vadd.f32 %v2022, %v2195
    %v2197 = vpop.f32.mrb[0].mxu0
    %v2198 = vadd.f32 %v2026, %v2197
    %2199 = vmatprep.mubr.bf16.mxu0 0
    %2200 = vmatmul.mubr.bf16.gmra.mrb[0].mxu0 %v2000
    %v2201 = vpop.f32.mrb[0].mxu0
    %v2202 = vadd.f32 %v2022, %v2201
    %v2203 = vpop.f32.mrb[0].mxu0
    %v2204 = vadd.f32 %v2026, %v2203
    %v2205 = vpop.f32.mrb[0].mxu0
    %v2206 = vadd.f32 %v2022, %v2205
    %v2207 = vpop.f32.mrb[0].mxu0
    %v2208 = vadd.f32 %v2026, %v2207
    %2209 = vmatprep.mubr.bf16.mxu0 0
    %2210 = vmatmul.mubr.bf16.gmra.mrb[0].mxu0 %v2001
    %v2211 = vpop.f32.mrb[0].mxu0
    %v2212 = vadd.f32 %v2022, %v2211
    %v2213 = vpop.f32.mrb[0].mxu0
    %v2214 = vadd.f32 %v2026, %v2213
    %v2215 = vpop.f32.mrb[0].mxu0
    %v2216 = vadd.f32 %v2022, %v2215
    %v2217 = vpop.f32.mrb[0].mxu0
    %v2218 = vadd.f32 %v2026, %v2217
    %2219 = vdwg.mxu0
    %v2220 = vxor.u32 %v2142, 2147483648
    %v2221 = vxor.u32 %v2144, 2147483648
    %v2222 = vxor.u32 %v2146, 2147483648
    %v2223 = vxor.u32 %v2148, 2147483648
    %v2224 = vxor.u32 %v2152, 2147483648
    %v2225 = vxor.u32 %v2154, 2147483648
    %v2226 = vxor.u32 %v2156, 2147483648
    %v2227 = vxor.u32 %v2158, 2147483648
    %v2228 = vxor.u32 %v2162, 2147483648
    %v2229 = vxor.u32 %v2164, 2147483648
    %v2230 = vxor.u32 %v2166, 2147483648
    %v2231 = vxor.u32 %v2168, 2147483648
    %v2232 = vxor.u32 %v2172, 2147483648
    %v2233 = vxor.u32 %v2174, 2147483648
    %v2234 = vxor.u32 %v2176, 2147483648
    %v2235 = vxor.u32 %v2178, 2147483648
    %v2236 = vxor.u32 %v2182, 2147483648
    %v2237 = vxor.u32 %v2184, 2147483648
    %v2238 = vxor.u32 %v2186, 2147483648
    %v2239 = vxor.u32 %v2188, 2147483648
    %v2240 = vxor.u32 %v2192, 2147483648
    %v2241 = vxor.u32 %v2194, 2147483648
    %v2242 = vxor.u32 %v2196, 2147483648
    %v2243 = vxor.u32 %v2198, 2147483648
    %v2244 = vxor.u32 %v2202, 2147483648
    %v2245 = vxor.u32 %v2204, 2147483648
    %v2246 = vxor.u32 %v2206, 2147483648
    %v2247 = vxor.u32 %v2208, 2147483648
    %v2248 = vxor.u32 %v2212, 2147483648
    %v2249 = vxor.u32 %v2214, 2147483648
    %v2250 = vxor.u32 %v2216, 2147483648
    %v2251 = vxor.u32 %v2218, 2147483648
    %v2252 = vmul.f32 %v2220, 1.442695
    %v2253 = vpow.pop %v2252
    %v2254 = vmul.f32 %v2221, 1.442695
    %v2255 = vpow.pop %v2254
    %v2256 = vmul.f32 %v2222, 1.442695
    %v2257 = vpow.pop %v2256
    %v2258 = vmul.f32 %v2223, 1.442695
    %v2259 = vpow.pop %v2258
    %v2260 = vmul.f32 %v2224, 1.442695
    %v2261 = vpow.pop %v2260
    %v2262 = vmul.f32 %v2225, 1.442695
    %v2263 = vpow.pop %v2262
    %v2264 = vmul.f32 %v2226, 1.442695
    %v2265 = vpow.pop %v2264
    %v2266 = vmul.f32 %v2227, 1.442695
    %v2267 = vpow.pop %v2266
    %v2268 = vmul.f32 %v2228, 1.442695
    %v2269 = vpow.pop %v2268
    %v2270 = vmul.f32 %v2229, 1.442695
    %v2271 = vpow.pop %v2270
    %v2272 = vmul.f32 %v2230, 1.442695
    %v2273 = vpow.pop %v2272
    %v2274 = vmul.f32 %v2231, 1.442695
    %v2275 = vpow.pop %v2274
    %v2276 = vmul.f32 %v2232, 1.442695
    %v2277 = vpow.pop %v2276
    %v2278 = vmul.f32 %v2233, 1.442695
    %v2279 = vpow.pop %v2278
    %v2280 = vmul.f32 %v2234, 1.442695
    %v2281 = vpow.pop %v2280
    %v2282 = vmul.f32 %v2235, 1.442695
    %v2283 = vpow.pop %v2282
    %v2284 = vmul.f32 %v2236, 1.442695
    %v2285 = vpow.pop %v2284
    %v2286 = vmul.f32 %v2237, 1.442695
    %v2287 = vpow.pop %v2286
    %v2288 = vmul.f32 %v2238, 1.442695
    %v2289 = vpow.pop %v2288
    %v2290 = vmul.f32 %v2239, 1.442695
    %v2291 = vpow.pop %v2290
    %v2292 = vmul.f32 %v2240, 1.442695
    %v2293 = vpow.pop %v2292
    %v2294 = vmul.f32 %v2241, 1.442695
    %v2295 = vpow.pop %v2294
    %v2296 = vmul.f32 %v2242, 1.442695
    %v2297 = vpow.pop %v2296
    %v2298 = vmul.f32 %v2243, 1.442695
    %v2299 = vpow.pop %v2298
    %v2300 = vmul.f32 %v2244, 1.442695
    %v2301 = vpow.pop %v2300
    %v2302 = vmul.f32 %v2245, 1.442695
    %v2303 = vpow.pop %v2302
    %v2304 = vmul.f32 %v2246, 1.442695
    %v2305 = vpow.pop %v2304
    %v2306 = vmul.f32 %v2247, 1.442695
    %v2307 = vpow.pop %v2306
    %v2308 = vmul.f32 %v2248, 1.442695
    %v2309 = vpow.pop %v2308
    %v2310 = vmul.f32 %v2249, 1.442695
    %v2311 = vpow.pop %v2310
    %v2312 = vmul.f32 %v2250, 1.442695
    %v2313 = vpow.pop %v2312
    %v2314 = vmul.f32 %v2251, 1.442695
    %v2315 = vpow.pop %v2314
    %v2316 = vadd.f32 %v2253, 1.0
    %v2317 = vadd.f32 %v2255, 1.0
    %v2318 = vadd.f32 %v2257, 1.0
    %v2319 = vadd.f32 %v2259, 1.0
    %v2320 = vadd.f32 %v2261, 1.0
    %v2321 = vadd.f32 %v2263, 1.0
    %v2322 = vadd.f32 %v2265, 1.0
    %v2323 = vadd.f32 %v2267, 1.0
    %v2324 = vadd.f32 %v2269, 1.0
    %v2325 = vadd.f32 %v2271, 1.0
    %v2326 = vadd.f32 %v2273, 1.0
    %v2327 = vadd.f32 %v2275, 1.0
    %v2328 = vadd.f32 %v2277, 1.0
    %v2329 = vadd.f32 %v2279, 1.0
    %v2330 = vadd.f32 %v2281, 1.0
    %v2331 = vadd.f32 %v2283, 1.0
    %v2332 = vadd.f32 %v2285, 1.0
    %v2333 = vadd.f32 %v2287, 1.0
    %v2334 = vadd.f32 %v2289, 1.0
    %v2335 = vadd.f32 %v2291, 1.0
    %v2336 = vadd.f32 %v2293, 1.0
    %v2337 = vadd.f32 %v2295, 1.0
    %v2338 = vadd.f32 %v2297, 1.0
    %v2339 = vadd.f32 %v2299, 1.0
    %v2340 = vadd.f32 %v2301, 1.0
    %v2341 = vadd.f32 %v2303, 1.0
    %v2342 = vadd.f32 %v2305, 1.0
    %v2343 = vadd.f32 %v2307, 1.0
    %v2344 = vadd.f32 %v2309, 1.0
    %v2345 = vadd.f32 %v2311, 1.0
    %v2346 = vadd.f32 %v2313, 1.0
    %v2347 = vadd.f32 %v2315, 1.0
    %v2348 = vrcp.pop %v2316
    %v2349 = vmul.f32 1.0, %v2348
    %v2350 = vrcp.pop %v2317
    %v2351 = vmul.f32 1.0, %v2350
    %v2352 = vrcp.pop %v2318
    %v2353 = vmul.f32 1.0, %v2352
    %v2354 = vrcp.pop %v2319
    %v2355 = vmul.f32 1.0, %v2354
    %v2356 = vrcp.pop %v2320
    %v2357 = vmul.f32 1.0, %v2356
    %v2358 = vrcp.pop %v2321
    %v2359 = vmul.f32 1.0, %v2358
    %v2360 = vrcp.pop %v2322
    %v2361 = vmul.f32 1.0, %v2360
    %v2362 = vrcp.pop %v2323
    %v2363 = vmul.f32 1.0, %v2362
    %v2364 = vrcp.pop %v2324
    %v2365 = vmul.f32 1.0, %v2364
    %v2366 = vrcp.pop %v2325
    %v2367 = vmul.f32 1.0, %v2366
    %v2368 = vrcp.pop %v2326
    %v2369 = vmul.f32 1.0, %v2368
    %v2370 = vrcp.pop %v2327
    %v2371 = vmul.f32 1.0, %v2370
    %v2372 = vrcp.pop %v2328
    %v2373 = vmul.f32 1.0, %v2372
    %v2374 = vrcp.pop %v2329
    %v2375 = vmul.f32 1.0, %v2374
    %v2376 = vrcp.pop %v2330
    %v2377 = vmul.f32 1.0, %v2376
    %v2378 = vrcp.pop %v2331
    %v2379 = vmul.f32 1.0, %v2378
    %v2380 = vrcp.pop %v2332
    %v2381 = vmul.f32 1.0, %v2380
    %v2382 = vrcp.pop %v2333
    %v2383 = vmul.f32 1.0, %v2382
    %v2384 = vrcp.pop %v2334
    %v2385 = vmul.f32 1.0, %v2384
    %v2386 = vrcp.pop %v2335
    %v2387 = vmul.f32 1.0, %v2386
    %v2388 = vrcp.pop %v2336
    %v2389 = vmul.f32 1.0, %v2388
    %v2390 = vrcp.pop %v2337
    %v2391 = vmul.f32 1.0, %v2390
    %v2392 = vrcp.pop %v2338
    %v2393 = vmul.f32 1.0, %v2392
    %v2394 = vrcp.pop %v2339
    %v2395 = vmul.f32 1.0, %v2394
    %v2396 = vrcp.pop %v2340
    %v2397 = vmul.f32 1.0, %v2396
    %v2398 = vrcp.pop %v2341
    %v2399 = vmul.f32 1.0, %v2398
    %v2400 = vrcp.pop %v2342
    %v2401 = vmul.f32 1.0, %v2400
    %v2402 = vrcp.pop %v2343
    %v2403 = vmul.f32 1.0, %v2402
    %v2404 = vrcp.pop %v2344
    %v2405 = vmul.f32 1.0, %v2404
    %v2406 = vrcp.pop %v2345
    %v2407 = vmul.f32 1.0, %v2406
    %v2408 = vrcp.pop %v2346
    %v2409 = vmul.f32 1.0, %v2408
    %v2410 = vrcp.pop %v2347
    %v2411 = vmul.f32 1.0, %v2410
    %2412 = vst [vmem:[#allocation13] sm:$0xff] %v2349
    %2413 = vst [vmem:[#allocation13 + $0x8] sm:$0xff] %v2351
    %2414 = vst [vmem:[#allocation13 + $0x10] sm:$0xff] %v2353
    %2415 = vst [vmem:[#allocation13 + $0x18] sm:$0xff] %v2355
    %2416 = vst [vmem:[#allocation13 + $0x20] sm:$0xff] %v2357
    %2417 = vst [vmem:[#allocation13 + $0x28] sm:$0xff] %v2359
    %2418 = vst [vmem:[#allocation13 + $0x30] sm:$0xff] %v2361
    %2419 = vst [vmem:[#allocation13 + $0x38] sm:$0xff] %v2363
    %2420 = vst [vmem:[#allocation13 + $0x40] sm:$0xff] %v2365
    %2421 = vst [vmem:[#allocation13 + $0x48] sm:$0xff] %v2367
    %2422 = vst [vmem:[#allocation13 + $0x50] sm:$0xff] %v2369
    %2423 = vst [vmem:[#allocation13 + $0x58] sm:$0xff] %v2371
    %2424 = vst [vmem:[#allocation13 + $0x60] sm:$0xff] %v2373
    %2425 = vst [vmem:[#allocation13 + $0x68] sm:$0xff] %v2375
    %2426 = vst [vmem:[#allocation13 + $0x70] sm:$0xff] %v2377
    %2427 = vst [vmem:[#allocation13 + $0x78] sm:$0xff] %v2379
    %2428 = vst [vmem:[#allocation13 + $0x80] sm:$0xff] %v2381
    %2429 = vst [vmem:[#allocation13 + $0x88] sm:$0xff] %v2383
    %2430 = vst [vmem:[#allocation13 + $0x90] sm:$0xff] %v2385
    %2431 = vst [vmem:[#allocation13 + $0x98] sm:$0xff] %v2387
    %2432 = vst [vmem:[#allocation13 + $0xa0] sm:$0xff] %v2389
    %2433 = vst [vmem:[#allocation13 + $0xa8] sm:$0xff] %v2391
    %2434 = vst [vmem:[#allocation13 + $0xb0] sm:$0xff] %v2393
    %2435 = vst [vmem:[#allocation13 + $0xb8] sm:$0xff] %v2395
    %2436 = vst [vmem:[#allocation13 + $0xc0] sm:$0xff] %v2397
    %2437 = vst [vmem:[#allocation13 + $0xc8] sm:$0xff] %v2399
    %2438 = vst [vmem:[#allocation13 + $0xd0] sm:$0xff] %v2401
    %2439 = vst [vmem:[#allocation13 + $0xd8] sm:$0xff] %v2403
    %2440 = vst [vmem:[#allocation13 + $0xe0] sm:$0xff] %v2405
    %2441 = vst [vmem:[#allocation13 + $0xe8] sm:$0xff] %v2407
    %2442 = vst [vmem:[#allocation13 + $0xf0] sm:$0xff] %v2409
    %2443 = vst [vmem:[#allocation13 + $0xf8] sm:$0xff] %v2411
    %2444 = vst [vmem:[#allocation14] sm:$0xff] %v1296
    %2445 = vst [vmem:[#allocation14 + $0x8] sm:$0xff] %v1297
    %2446 = vst [vmem:[#allocation14 + $0x10] sm:$0xff] %v1298
    %2447 = vst [vmem:[#allocation14 + $0x18] sm:$0xff] %v1299
    %2448 = vst [vmem:[#allocation14 + $0x20] sm:$0xff] %v1300
    %2449 = vst [vmem:[#allocation14 + $0x28] sm:$0xff] %v1301
    %2450 = vst [vmem:[#allocation14 + $0x30] sm:$0xff] %v1302
    %2451 = vst [vmem:[#allocation14 + $0x38] sm:$0xff] %v1303
    %2452 = vst [vmem:[#allocation14 + $0x40] sm:$0xff] %v1304
    %2453 = vst [vmem:[#allocation14 + $0x48] sm:$0xff] %v1305
    %2454 = vst [vmem:[#allocation14 + $0x50] sm:$0xff] %v1306
    %2455 = vst [vmem:[#allocation14 + $0x58] sm:$0xff] %v1307
    %2456 = vst [vmem:[#allocation14 + $0x60] sm:$0xff] %v1308
    %2457 = vst [vmem:[#allocation14 + $0x68] sm:$0xff] %v1309
    %2458 = vst [vmem:[#allocation14 + $0x70] sm:$0xff] %v1310
    %2459 = vst [vmem:[#allocation14 + $0x78] sm:$0xff] %v1311
    %2460 = vst [vmem:[#allocation14 + $0x80] sm:$0xff] %v1312
    %2461 = vst [vmem:[#allocation14 + $0x88] sm:$0xff] %v1313
    %2462 = vst [vmem:[#allocation14 + $0x90] sm:$0xff] %v1314
    %2463 = vst [vmem:[#allocation14 + $0x98] sm:$0xff] %v1315
    %2464 = vst [vmem:[#allocation14 + $0xa0] sm:$0xff] %v1316
    %2465 = vst [vmem:[#allocation14 + $0xa8] sm:$0xff] %v1317
    %2466 = vst [vmem:[#allocation14 + $0xb0] sm:$0xff] %v1318
    %2467 = vst [vmem:[#allocation14 + $0xb8] sm:$0xff] %v1319
    %2468 = vst [vmem:[#allocation14 + $0xc0] sm:$0xff] %v1320
    %2469 = vst [vmem:[#allocation14 + $0xc8] sm:$0xff] %v1321
    %2470 = vst [vmem:[#allocation14 + $0xd0] sm:$0xff] %v1322
    %2471 = vst [vmem:[#allocation14 + $0xd8] sm:$0xff] %v1323
    %2472 = vst [vmem:[#allocation14 + $0xe0] sm:$0xff] %v1324
    %2473 = vst [vmem:[#allocation14 + $0xe8] sm:$0xff] %v1325
    %2474 = vst [vmem:[#allocation14 + $0xf0] sm:$0xff] %v1326
    %2475 = vst [vmem:[#allocation14 + $0xf8] sm:$0xff] %v1327
    // Predicated region
    $region50: #{tpu_custom_call.1} parent=1 // pred_check
      _
    $region51: #{tpu_custom_call.1} parent=1 // pred_check_branch
      %2477 = sbr.rel (0) target = $region53
    $region52: #{tpu_custom_call.1} parent=1 // pred_region
      %s2479 = ssub.s32 4096, 4096
      %2480 = vsyncadd [#allocation4], %s2479
      %s2481 = sshll.u32 [#allocation13], 4
      %s2482 = int_to_ptr.vmem [resolvable:$true] %s2481
      %2487 = dma.vmem_to_hbm [thread:$0]  %s2482, 4096, %s6, [#allocation4], 256, 256, 16
    $region53: #{tpu_custom_call.1} parent=1 // pred_fallthru
      _
    // Predicated region
    $region54: #{tpu_custom_call.1} parent=1 // pred_check
      _
    $region55: #{tpu_custom_call.1} parent=1 // pred_check_branch
      %2489 = sbr.rel (0) target = $region57
    $region56: #{tpu_custom_call.1} parent=1 // pred_region
      %s2491 = ssub.s32 4096, 4096
      %2492 = vsyncadd [#allocation15], %s2491
      %s2493 = sshll.u32 [#allocation14], 4
      %s2494 = int_to_ptr.vmem [resolvable:$true] %s2493
      %2499 = dma.vmem_to_hbm [thread:$0]  %s2494, 4096, %s7, [#allocation15], 256, 256, 16
    $region57: #{tpu_custom_call.1} parent=1 // pred_fallthru
      _
    // Predicated region
    $region58: #{tpu_custom_call.1} parent=1 // pred_check
      _
    $region59: #{tpu_custom_call.1} parent=1 // pred_check_branch
      %2501 = sbr.rel (0) target = $region61
    $region60: #{tpu_custom_call.1} parent=1 // pred_region
      %2502 = dma.done [#allocation4], 4096
    $region61: #{tpu_custom_call.1} parent=1 // pred_fallthru
      _
    // Predicated region
    $region62: #{tpu_custom_call.1} parent=1 // pred_check
      _
    $region63: #{tpu_custom_call.1} parent=1 // pred_check_branch
      %2504 = sbr.rel (0) target = $region65
    $region64: #{tpu_custom_call.1} parent=1 // pred_region
      %2505 = dma.done [#allocation15], 4096
    $region65: #{tpu_custom_call.1} parent=1 // pred_fallthru
      _
    %2506 = vsyncpa [#allocation3], 1
    %2507 = vsyncpa [#allocation6], 1
    %2508 = vsyncpa [#allocation9], 1
    %2509 = vsyncpa [#allocation12], 1
    %2510 = vsyncpa [#allocation4], 1
    %2511 = vsyncpa [#allocation15], 1

</llo_original>
